<compile_context>
chip_gen: v6e
topology: v6e:2x2x1
jax: 0.10.0
libtpu: 0.0.40
codegen_flags: <defaults>
</compile_context>

<pallas_src>
import functools

import jax
import jax.numpy as jnp
from jax.experimental import pallas as pl
from jax.experimental.pallas import tpu as pltpu

IN_DIM = 1024      # fixed by the module: nn.Linear(1024, shared_dim)
BN_EPS = 1e-5


def _round_up(x, m):
    return ((x + m - 1) // m) * m


# ------------------------------- kernel ----------------------------------- #

def _fused_kernel(xt_ref, xi_ref, w1_ref, s1_ref, c1_ref, w2_ref, s2_ref, c2_ref,
                  ot_ref, oi_ref):
    """One batch tile, both branches: relu((relu((x@W1)*s1+c1))@W2*s2+c2)."""
    def branch(x, b):
        w1 = w1_ref[b]                                   # (F, D), static index
        h = jnp.dot(x.astype(w1.dtype), w1, preferred_element_type=jnp.float32)
        h = jnp.maximum(h * s1_ref[b] + c1_ref[b], 0.0)  # f32 BN + bias + ReLU
        w2 = w2_ref[b]                                   # (D, D)
        o = jnp.dot(h.astype(w2.dtype), w2, preferred_element_type=jnp.float32)
        return jnp.maximum(o * s2_ref[b] + c2_ref[b], 0.0)

    ot_ref[...] = branch(xt_ref[...], 0).astype(ot_ref.dtype)   # text branch
    oi_ref[...] = branch(xi_ref[...], 1).astype(oi_ref.dtype)   # image branch


# --------------------------- one-time param prep --------------------------- #

def prepare_params(params, *, use_bf16=False, eps=BN_EPS):
    """One-time parameter preparation — call once, reuse for every forward.

    Folds eval-mode BatchNorm1d into an f32 per-channel scale/bias (applied as
    a kernel epilogue, so a bf16 weight cast never touches 1/sqrt(var)), and
    stacks the text/image branches along a leading axis of 2.

    params = {"text": {...}, "image": {...}} with per-branch keys
      w1 [1024, D], b1 [D], bn1_{gamma,beta,mean,var} [D],
      w2 [D,   D],  b2 [D], bn2_{gamma,beta,mean,var} [D]
    (weights already [in, out], i.e. transposed vs torch's [out, in]).
    """
    w_dtype = jnp.bfloat16 if use_bf16 else jnp.float32

    def fold(p):
        s1 = p["bn1_gamma"] * jax.lax.rsqrt(p["bn1_var"] + eps)
        c1 = (p["b1"] - p["bn1_mean"]) * s1 + p["bn1_beta"]
        s2 = p["bn2_gamma"] * jax.lax.rsqrt(p["bn2_var"] + eps)
        c2 = (p["b2"] - p["bn2_mean"]) * s2 + p["bn2_beta"]
        return (p["w1"].astype(w_dtype), s1, c1, p["w2"].astype(w_dtype), s2, c2)

    t = fold(params["text"])
    i = fold(params["image"])

    def stack_vec(a, b):
        return jnp.stack([a, b], 0).astype(jnp.float32).reshape(2, 1, -1)

    return dict(
        w1=jnp.stack([t[0], i[0]], 0),   # [2, 1024, D]
        s1=stack_vec(t[1], i[1]),        # [2, 1, D] f32
        c1=stack_vec(t[2], i[2]),        # [2, 1, D] f32
        w2=jnp.stack([t[3], i[3]], 0),   # [2, D, D]
        s2=stack_vec(t[4], i[4]),        # [2, 1, D] f32
        c2=stack_vec(t[5], i[5]),        # [2, 1, D] f32
    )


def _vmem_limit_bytes(bb, F, D, x_bytes, w_bytes, o_bytes):
    x_buf = 2 * 2 * bb * F * x_bytes            # text + image tiles, double-buffered
    o_buf = 2 * 2 * bb * D * o_bytes            # text + image outputs, double-buffered
    w_buf = 2 * 2 * (F * D + D * D) * w_bytes   # stacked W1/W2, double-buffered
    sc_buf = 2 * 4 * 2 * 1 * D * 4              # s1/c1/s2/c2 (f32), double-buffered
    total = x_buf + o_buf + w_buf + sc_buf
    return min(int(total * 1.25) + (2 << 20), 96 << 20)


# --------------------------------- forward --------------------------------- #

@functools.partial(jax.jit, static_argnames=("block_b",))
def unimodal_detection_forward(text_encoding, image_encoding, folded_params,
                               block_b=1024):
    """Eval-mode UnimodalDetection.forward -> (text_prime, image_prime).

    `folded_params` must come from prepare_params() (one-time prep)."""
    if text_encoding.shape != image_encoding.shape:
        raise ValueError("text/image encodings must share the shape (B, 1024)")
    B, F = text_encoding.shape
    D = folded_params["w1"].shape[-1]
    out_dtype = text_encoding.dtype

    # Batch tile: as large as requested (amortize per-step overhead), multiple
    # of 8 (sublanes); aim for >=2 grid steps when B > 8 so the "parallel"
    # batch axis can split across both v7x TensorCores even at small batch.
    bb = min(block_b, _round_up(B, 8))
    if B > 8:
        bb = min(bb, _round_up(pl.cdiv(B, 2), 8))
    bb = _round_up(bb, 8)
    n = pl.cdiv(B, bb)   # partial last tile handled by Pallas masking (no jnp.pad)

    vmem = _vmem_limit_bytes(
        bb, F, D,
        text_encoding.dtype.itemsize,
        folded_params["w1"].dtype.itemsize,
        jnp.dtype(out_dtype).itemsize)

    x_spec = pl.BlockSpec((bb, F), lambda i: (i, 0))
    out_spec = pl.BlockSpec((bb, D), lambda i: (i, 0))   # D=128 -> lane-dense stores

    def resident(shape):   # full-array block, constant index -> DMA'd once
        return pl.BlockSpec(shape, lambda i: (0,) * len(shape))

    text_prime, image_prime = pl.pallas_call(
        _fused_kernel,
        out_shape=(jax.ShapeDtypeStruct((B, D), out_dtype),
                   jax.ShapeDtypeStruct((B, D), out_dtype)),
        grid_spec=pltpu.PrefetchScalarGridSpec(
            num_scalar_prefetch=0,
            grid=(n,),
            in_specs=[
                x_spec,                 # text tile (pipelined)
                x_spec,                 # image tile (pipelined)
                resident((2, F, D)),    # W1 stacked   (VMEM resident)
                resident((2, 1, D)),    # s1 (f32)
                resident((2, 1, D)),    # c1 (f32)
                resident((2, D, D)),    # W2 stacked   (VMEM resident)
                resident((2, 1, D)),    # s2 (f32)
                resident((2, 1, D)),    # c2 (f32)
            ],
            out_specs=[out_spec, out_spec],
        ),
        compiler_params=pltpu.CompilerParams(
            dimension_semantics=("parallel",),   # batch tiles shard across TCs
            vmem_limit_bytes=vmem,
        ),
    )(text_encoding, image_encoding,
      folded_params["w1"], folded_params["s1"], folded_params["c1"],
      folded_params["w2"], folded_params["s2"], folded_params["c2"])
    return text_prime, image_prime


# ----------------------------- demo / checks ------------------------------ #

def _init_branch(key, shared_dim=128, dtype=jnp.float32):
    ks = jax.random.split(key, 12)
    lim1 = 1.0 / (IN_DIM ** 0.5)
    lim2 = 1.0 / (shared_dim ** 0.5)
    return dict(
        w1=jax.random.uniform(ks[0], (IN_DIM, shared_dim), dtype, -lim1, lim1),
        b1=jax.random.uniform(ks[1], (shared_dim,), dtype, -lim1, lim1),
        bn1_gamma=jax.random.uniform(ks[2], (shared_dim,), dtype, 0.5, 1.5),
        bn1_beta=jax.random.uniform(ks[3], (shared_dim,), dtype, -0.5, 0.5),
        bn1_mean=jax.random.normal(ks[4], (shared_dim,), dtype) * 0.1,
        bn1_var=jax.random.uniform(ks[5], (shared_dim,), dtype, 0.5, 1.5),
        w2=jax.random.uniform(ks[6], (shared_dim, shared_dim), dtype, -lim2, lim2),
        b2=jax.random.uniform(ks[7], (shared_dim,), dtype, -lim2, lim2),
        bn2_gamma=jax.random.uniform(ks[8], (shared_dim,), dtype, 0.5, 1.5),
        bn2_beta=jax.random.uniform(ks[9], (shared_dim,), dtype, -0.5, 0.5),
        bn2_mean=jax.random.normal(ks[10], (shared_dim,), dtype) * 0.1,
        bn2_var=jax.random.uniform(ks[11], (shared_dim,), dtype, 0.5, 1.5),
    )


def _ref_branch(x, p, eps=BN_EPS):
    h = x @ p["w1"] + p["b1"]
    h = (h - p["bn1_mean"]) * (p["bn1_gamma"] / jnp.sqrt(p["bn1_var"] + eps)) + p["bn1_beta"]
    h = jnp.maximum(h, 0.0)
    h = h @ p["w2"] + p["b2"]
    h = (h - p["bn2_mean"]) * (p["bn2_gamma"] / jnp.sqrt(p["bn2_var"] + eps)) + p["bn2_beta"]
    return jnp.maximum(h, 0.0)


if __name__ == "__main__":
    key = jax.random.PRNGKey(0)
    k_t, k_i, k_pt, k_pi = jax.random.split(key, 4)

    batch, shared_dim = 16, 128
    text_enc = jax.random.normal(k_t, (batch, IN_DIM), jnp.float32)
    image_enc = jax.random.normal(k_i, (batch, IN_DIM), jnp.float32)
    params = {"text": _init_branch(k_pt, shared_dim),
              "image": _init_branch(k_pi, shared_dim)}

    ref_t = _ref_branch(text_enc, params["text"])
    ref_i = _ref_branch(image_enc, params["image"])

    # f32 path + correctness check against the pure-JAX eval-mode reference.
    folded = prepare_params(params)                       # one-time prep
    text_prime, image_prime = jax.block_until_ready(
        unimodal_detection_forward(text_enc, image_enc, folded))
    assert text_prime.shape == (batch, shared_dim)
    assert image_prime.shape == (batch, shared_dim)
    assert jnp.allclose(text_prime, ref_t, atol=2e-4, rtol=2e-4)
    assert jnp.allclose(image_prime, ref_i, atol=2e-4, rtol=2e-4)

    # Partial-last-tile path (no jnp.pad): odd batch, masked writeback.
    b_odd = 13
    t_o, i_o = jax.block_until_ready(
        unimodal_detection_forward(text_enc[:b_odd], image_enc[:b_odd], folded))
    assert jnp.allclose(t_o, ref_t[:b_odd], atol=2e-4, rtol=2e-4)
    assert jnp.allclose(i_o, ref_i[:b_odd], atol=2e-4, rtol=2e-4)

    # bf16-weight path (v5e/v6e/v7x): x stays f32 in HBM (cast inside the
    # kernel), weights bf16, BN scale/bias epilogue stays f32. Loose tolerance.
    folded_bf16 = prepare_params(params, use_bf16=True)   # one-time prep
    t_bf, i_bf = jax.block_until_ready(
        unimodal_detection_forward(text_enc, image_enc, folded_bf16))
    assert jnp.allclose(t_bf, ref_t, atol=1e-1, rtol=1e-1)
    assert jnp.allclose(i_bf, ref_i, atol=1e-1, rtol=1e-1)

    print("KERNEL_OK")
</pallas_src>

<mosaic_0001>
module attributes {stable_mosaic.version = 11 : i64} {
  func.func @_fused_kernel(%arg0: i32, %arg1: memref<8x1024xf32, #tpu.memory_space<vmem>>, %arg2: memref<8x1024xf32, #tpu.memory_space<vmem>>, %arg3: memref<2x1024x128xf32, #tpu.memory_space<vmem>>, %arg4: memref<2x1x128xf32, #tpu.memory_space<vmem>>, %arg5: memref<2x1x128xf32, #tpu.memory_space<vmem>>, %arg6: memref<2x128x128xf32, #tpu.memory_space<vmem>>, %arg7: memref<2x1x128xf32, #tpu.memory_space<vmem>>, %arg8: memref<2x1x128xf32, #tpu.memory_space<vmem>>, %arg9: memref<8x128xf32, #tpu.memory_space<vmem>>, %arg10: memref<8x128xf32, #tpu.memory_space<vmem>>) attributes {dimension_semantics = [#tpu.dimension_semantics<parallel>], iteration_bounds = array<i64: 2>, scalar_prefetch = 0 : i64, scratch_operands = 0 : i64, tpu.core_type = #tpu.core_type<tc>, window_params = [{transform_indices = @transform_0, window_bounds = array<i64: 8, 1024>}, {transform_indices = @transform_1, window_bounds = array<i64: 8, 1024>}, {pipeline_mode = #tpu.pipeline_mode<synchronous>, transform_indices = @transform_2, window_bounds = array<i64: 2, 1024, 128>}, {pipeline_mode = #tpu.pipeline_mode<synchronous>, transform_indices = @transform_3, window_bounds = array<i64: 2, 1, 128>}, {pipeline_mode = #tpu.pipeline_mode<synchronous>, transform_indices = @transform_4, window_bounds = array<i64: 2, 1, 128>}, {pipeline_mode = #tpu.pipeline_mode<synchronous>, transform_indices = @transform_5, window_bounds = array<i64: 2, 128, 128>}, {pipeline_mode = #tpu.pipeline_mode<synchronous>, transform_indices = @transform_6, window_bounds = array<i64: 2, 1, 128>}, {pipeline_mode = #tpu.pipeline_mode<synchronous>, transform_indices = @transform_7, window_bounds = array<i64: 2, 1, 128>}, {transform_indices = @transform_8, window_bounds = array<i64: 8, 128>}, {transform_indices = @transform_9, window_bounds = array<i64: 8, 128>}]} {
    %c0 = arith.constant 0 : index
    %c0_0 = arith.constant 0 : index
    %0 = vector.load %arg1[%c0, %c0_0] : memref<8x1024xf32, #tpu.memory_space<vmem>>, vector<8x1024xf32>
    %c0_1 = arith.constant 0 : index
    %c0_2 = arith.constant 0 : index
    %c0_3 = arith.constant 0 : index
    %1 = vector.load %arg3[%c0_1, %c0_2, %c0_3] : memref<2x1024x128xf32, #tpu.memory_space<vmem>>, vector<1x1024x128xf32>
    %2 = vector.shape_cast %1 : vector<1x1024x128xf32> to vector<1024x128xf32>
    %cst = arith.constant dense<0.000000e+00> : vector<8x128xf32>
    %3 = tpu.matmul %0, %2, %cst {dimension_numbers = #tpu.dot_dimension_numbers<[1], [0], [0], [1], [0, 0, 1, 1], [], []>} : vector<8x1024xf32>, vector<1024x128xf32>, vector<8x128xf32> -> vector<8x128xf32>
    %c0_4 = arith.constant 0 : index
    %c0_5 = arith.constant 0 : index
    %c0_6 = arith.constant 0 : index
    %4 = vector.load %arg4[%c0_4, %c0_5, %c0_6] : memref<2x1x128xf32, #tpu.memory_space<vmem>>, vector<1x1x128xf32>
    %5 = vector.shape_cast %4 : vector<1x1x128xf32> to vector<1x128xf32>
    %6 = vector.broadcast %5 : vector<1x128xf32> to vector<8x128xf32>
    %7 = arith.mulf %3, %6 : vector<8x128xf32>
    %c0_7 = arith.constant 0 : index
    %c0_8 = arith.constant 0 : index
    %c0_9 = arith.constant 0 : index
    %8 = vector.load %arg5[%c0_7, %c0_8, %c0_9] : memref<2x1x128xf32, #tpu.memory_space<vmem>>, vector<1x1x128xf32>
    %9 = vector.shape_cast %8 : vector<1x1x128xf32> to vector<1x128xf32>
    %10 = vector.broadcast %9 : vector<1x128xf32> to vector<8x128xf32>
    %11 = arith.addf %7, %10 : vector<8x128xf32>
    %cst_10 = arith.constant 0.000000e+00 : f32
    %12 = vector.broadcast %cst_10 : f32 to vector<8x128xf32>
    %13 = arith.maximumf %11, %12 : vector<8x128xf32>
    %c0_11 = arith.constant 0 : index
    %c0_12 = arith.constant 0 : index
    %c0_13 = arith.constant 0 : index
    %14 = vector.load %arg6[%c0_11, %c0_12, %c0_13] : memref<2x128x128xf32, #tpu.memory_space<vmem>>, vector<1x128x128xf32>
    %15 = vector.shape_cast %14 : vector<1x128x128xf32> to vector<128x128xf32>
    %cst_14 = arith.constant dense<0.000000e+00> : vector<8x128xf32>
    %16 = tpu.matmul %13, %15, %cst_14 {dimension_numbers = #tpu.dot_dimension_numbers<[1], [0], [0], [1], [0, 0, 1, 1], [], []>} : vector<8x128xf32>, vector<128x128xf32>, vector<8x128xf32> -> vector<8x128xf32>
    %c0_15 = arith.constant 0 : index
    %c0_16 = arith.constant 0 : index
    %c0_17 = arith.constant 0 : index
    %17 = vector.load %arg7[%c0_15, %c0_16, %c0_17] : memref<2x1x128xf32, #tpu.memory_space<vmem>>, vector<1x1x128xf32>
    %18 = vector.shape_cast %17 : vector<1x1x128xf32> to vector<1x128xf32>
    %19 = vector.broadcast %18 : vector<1x128xf32> to vector<8x128xf32>
    %20 = arith.mulf %16, %19 : vector<8x128xf32>
    %c0_18 = arith.constant 0 : index
    %c0_19 = arith.constant 0 : index
    %c0_20 = arith.constant 0 : index
    %21 = vector.load %arg8[%c0_18, %c0_19, %c0_20] : memref<2x1x128xf32, #tpu.memory_space<vmem>>, vector<1x1x128xf32>
    %22 = vector.shape_cast %21 : vector<1x1x128xf32> to vector<1x128xf32>
    %23 = vector.broadcast %22 : vector<1x128xf32> to vector<8x128xf32>
    %24 = arith.addf %20, %23 : vector<8x128xf32>
    %cst_21 = arith.constant 0.000000e+00 : f32
    %25 = vector.broadcast %cst_21 : f32 to vector<8x128xf32>
    %26 = arith.maximumf %24, %25 : vector<8x128xf32>
    %c0_22 = arith.constant 0 : index
    %c0_23 = arith.constant 0 : index
    %27 = vector.load %arg9[%c0_22, %c0_23] : memref<8x128xf32, #tpu.memory_space<vmem>>, vector<8x128xf32>
    tpu.vector_store %arg9[%c0_22, %c0_23], %26 {strides = array<i32>} : memref<8x128xf32, #tpu.memory_space<vmem>>, vector<8x128xf32>,
    %c0_24 = arith.constant 0 : index
    %c0_25 = arith.constant 0 : index
    %28 = vector.load %arg2[%c0_24, %c0_25] : memref<8x1024xf32, #tpu.memory_space<vmem>>, vector<8x1024xf32>
    %c1 = arith.constant 1 : index
    %c0_26 = arith.constant 0 : index
    %c0_27 = arith.constant 0 : index
    %29 = vector.load %arg3[%c1, %c0_26, %c0_27] : memref<2x1024x128xf32, #tpu.memory_space<vmem>>, vector<1x1024x128xf32>
    %30 = vector.shape_cast %29 : vector<1x1024x128xf32> to vector<1024x128xf32>
    %cst_28 = arith.constant dense<0.000000e+00> : vector<8x128xf32>
    %31 = tpu.matmul %28, %30, %cst_28 {dimension_numbers = #tpu.dot_dimension_numbers<[1], [0], [0], [1], [0, 0, 1, 1], [], []>} : vector<8x1024xf32>, vector<1024x128xf32>, vector<8x128xf32> -> vector<8x128xf32>
    %c1_29 = arith.constant 1 : index
    %c0_30 = arith.constant 0 : index
    %c0_31 = arith.constant 0 : index
    %32 = vector.load %arg4[%c1_29, %c0_30, %c0_31] : memref<2x1x128xf32, #tpu.memory_space<vmem>>, vector<1x1x128xf32>
    %33 = vector.shape_cast %32 : vector<1x1x128xf32> to vector<1x128xf32>
    %34 = vector.broadcast %33 : vector<1x128xf32> to vector<8x128xf32>
    %35 = arith.mulf %31, %34 : vector<8x128xf32>
    %c1_32 = arith.constant 1 : index
    %c0_33 = arith.constant 0 : index
    %c0_34 = arith.constant 0 : index
    %36 = vector.load %arg5[%c1_32, %c0_33, %c0_34] : memref<2x1x128xf32, #tpu.memory_space<vmem>>, vector<1x1x128xf32>
    %37 = vector.shape_cast %36 : vector<1x1x128xf32> to vector<1x128xf32>
    %38 = vector.broadcast %37 : vector<1x128xf32> to vector<8x128xf32>
    %39 = arith.addf %35, %38 : vector<8x128xf32>
    %cst_35 = arith.constant 0.000000e+00 : f32
    %40 = vector.broadcast %cst_35 : f32 to vector<8x128xf32>
    %41 = arith.maximumf %39, %40 : vector<8x128xf32>
    %c1_36 = arith.constant 1 : index
    %c0_37 = arith.constant 0 : index
    %c0_38 = arith.constant 0 : index
    %42 = vector.load %arg6[%c1_36, %c0_37, %c0_38] : memref<2x128x128xf32, #tpu.memory_space<vmem>>, vector<1x128x128xf32>
    %43 = vector.shape_cast %42 : vector<1x128x128xf32> to vector<128x128xf32>
    %cst_39 = arith.constant dense<0.000000e+00> : vector<8x128xf32>
    %44 = tpu.matmul %41, %43, %cst_39 {dimension_numbers = #tpu.dot_dimension_numbers<[1], [0], [0], [1], [0, 0, 1, 1], [], []>} : vector<8x128xf32>, vector<128x128xf32>, vector<8x128xf32> -> vector<8x128xf32>
    %c1_40 = arith.constant 1 : index
    %c0_41 = arith.constant 0 : index
    %c0_42 = arith.constant 0 : index
    %45 = vector.load %arg7[%c1_40, %c0_41, %c0_42] : memref<2x1x128xf32, #tpu.memory_space<vmem>>, vector<1x1x128xf32>
    %46 = vector.shape_cast %45 : vector<1x1x128xf32> to vector<1x128xf32>
    %47 = vector.broadcast %46 : vector<1x128xf32> to vector<8x128xf32>
    %48 = arith.mulf %44, %47 : vector<8x128xf32>
    %c1_43 = arith.constant 1 : index
    %c0_44 = arith.constant 0 : index
    %c0_45 = arith.constant 0 : index
    %49 = vector.load %arg8[%c1_43, %c0_44, %c0_45] : memref<2x1x128xf32, #tpu.memory_space<vmem>>, vector<1x1x128xf32>
    %50 = vector.shape_cast %49 : vector<1x1x128xf32> to vector<1x128xf32>
    %51 = vector.broadcast %50 : vector<1x128xf32> to vector<8x128xf32>
    %52 = arith.addf %48, %51 : vector<8x128xf32>
    %cst_46 = arith.constant 0.000000e+00 : f32
    %53 = vector.broadcast %cst_46 : f32 to vector<8x128xf32>
    %54 = arith.maximumf %52, %53 : vector<8x128xf32>
    %c0_47 = arith.constant 0 : index
    %c0_48 = arith.constant 0 : index
    %55 = vector.load %arg10[%c0_47, %c0_48] : memref<8x128xf32, #tpu.memory_space<vmem>>, vector<8x128xf32>
    tpu.vector_store %arg10[%c0_47, %c0_48], %54 {strides = array<i32>} : memref<8x128xf32, #tpu.memory_space<vmem>>, vector<8x128xf32>,
    return
  }
  func.func @transform_0(%arg0: i32) -> (i32, i32) {
    %c0_i32 = arith.constant 0 : i32
    %c0_i32_0 = arith.constant 0 : i32
    return %arg0, %c0_i32 : i32, i32
  }
  func.func @transform_1(%arg0: i32) -> (i32, i32) {
    %c0_i32 = arith.constant 0 : i32
    %c0_i32_0 = arith.constant 0 : i32
    return %arg0, %c0_i32 : i32, i32
  }
  func.func @transform_2(%arg0: i32) -> (i32, i32, i32) {
    %c0_i32 = arith.constant 0 : i32
    %c0_i32_0 = arith.constant 0 : i32
    %c0_i32_1 = arith.constant 0 : i32
    %c0_i32_2 = arith.constant 0 : i32
    return %c0_i32, %c0_i32_0, %c0_i32_1 : i32, i32, i32
  }
  func.func @transform_3(%arg0: i32) -> (i32, i32, i32) {
    %c0_i32 = arith.constant 0 : i32
    %c0_i32_0 = arith.constant 0 : i32
    %c0_i32_1 = arith.constant 0 : i32
    %c0_i32_2 = arith.constant 0 : i32
    return %c0_i32, %c0_i32_0, %c0_i32_1 : i32, i32, i32
  }
  func.func @transform_4(%arg0: i32) -> (i32, i32, i32) {
    %c0_i32 = arith.constant 0 : i32
    %c0_i32_0 = arith.constant 0 : i32
    %c0_i32_1 = arith.constant 0 : i32
    %c0_i32_2 = arith.constant 0 : i32
    return %c0_i32, %c0_i32_0, %c0_i32_1 : i32, i32, i32
  }
  func.func @transform_5(%arg0: i32) -> (i32, i32, i32) {
    %c0_i32 = arith.constant 0 : i32
    %c0_i32_0 = arith.constant 0 : i32
    %c0_i32_1 = arith.constant 0 : i32
    %c0_i32_2 = arith.constant 0 : i32
    return %c0_i32, %c0_i32_0, %c0_i32_1 : i32, i32, i32
  }
  func.func @transform_6(%arg0: i32) -> (i32, i32, i32) {
    %c0_i32 = arith.constant 0 : i32
    %c0_i32_0 = arith.constant 0 : i32
    %c0_i32_1 = arith.constant 0 : i32
    %c0_i32_2 = arith.constant 0 : i32
    return %c0_i32, %c0_i32_0, %c0_i32_1 : i32, i32, i32
  }
  func.func @transform_7(%arg0: i32) -> (i32, i32, i32) {
    %c0_i32 = arith.constant 0 : i32
    %c0_i32_0 = arith.constant 0 : i32
    %c0_i32_1 = arith.constant 0 : i32
    %c0_i32_2 = arith.constant 0 : i32
    return %c0_i32, %c0_i32_0, %c0_i32_1 : i32, i32, i32
  }
  func.func @transform_8(%arg0: i32) -> (i32, i32) {
    %c0_i32 = arith.constant 0 : i32
    %c0_i32_0 = arith.constant 0 : i32
    return %arg0, %c0_i32 : i32, i32
  }
  func.func @transform_9(%arg0: i32) -> (i32, i32) {
    %c0_i32 = arith.constant 0 : i32
    %c0_i32_0 = arith.constant 0 : i32
    return %arg0, %c0_i32 : i32, i32
  }
}

</mosaic_0001>

<llo_original>
// kernel: unimodal_detection_forward.1
$region0: #{unimodal_detection_forward.1}
  #allocation0 [shape = 'u32[]', space=smem, size = 0x4, offset = 0x4, fixed_abs, tag = 'smem constant byte address 0x4 - core index']
  #allocation1 [shape = 'u32[144,128]{1,0:T(1,128)}', space=vmem, size = 0x12000, scoped, tag = 'internal scratch']
  %s0 = inlined_call_operand.hbm [shape: f32[16,1024], index: 0, kind: input, shape index: {}]
  %s1 = inlined_call_operand.hbm [shape: f32[16,1024], index: 1, kind: input, shape index: {}]
  %s2 = inlined_call_operand.hbm [shape: f32[2,1024,128], index: 2, kind: input, shape index: {}]
  %s3 = inlined_call_operand.vmem [shape: f32[2,1,128], index: 3, kind: input, shape index: {}]
  %s4 = inlined_call_operand.hbm [shape: f32[2,1,128], index: 4, kind: input, shape index: {}]
  %s5 = inlined_call_operand.hbm [shape: f32[2,128,128], index: 5, kind: input, shape index: {}]
  %s6 = inlined_call_operand.vmem [shape: f32[2,1,128], index: 6, kind: input, shape index: {}]
  %s7 = inlined_call_operand.hbm [shape: f32[2,1,128], index: 7, kind: input, shape index: {}]
  %s8 = inlined_call_operand.hbm [shape: f32[16,128], index: 8, kind: output, shape index: {0}]
  %s9 = inlined_call_operand.hbm [shape: f32[16,128], index: 9, kind: output, shape index: {1}]
  %10 = xla_tuple %s8, %s9
  %s11 = sld [smem:[#allocation0]]
  $region97: #{unimodal_detection_forward.1} parent=0
    _
  %s13 = ssub.s32 1, %s11
  %s14 = scalar_select 0, %s13, %s11
  $region1: #{unimodal_detection_forward.1} parent=0
    #allocation2 [shape = 'u8[65536]{0}', space=vmem, size = 0x10000, scoped, tag = 'input window, operand 0']
    #allocation3 [shape = 's32[2]{0}', space=sflag, size = 0x8, scoped, tag = 'scoped memory for unimodal_detection_forward.1']
    #allocation4 [shape = 's32[2]{0}', space=sflag, size = 0x8, scoped, tag = 'scoped memory for unimodal_detection_forward.1']
    #allocation5 [shape = 'u8[65536]{0}', space=vmem, size = 0x10000, scoped, tag = 'input window, operand 1']
    #allocation6 [shape = 's32[2]{0}', space=sflag, size = 0x8, scoped, tag = 'scoped memory for unimodal_detection_forward.1']
    #allocation7 [shape = 'u8[1048576]{0}', space=vmem, size = 0x100000, scoped, tag = 'input window, operand 2, single buffered']
    #allocation8 [shape = 'u8[1024]{0}', space=vmem, size = 0x400, scoped, tag = 'input window, operand 4, single buffered']
    #allocation9 [shape = 's32[1]{0}', space=sflag, size = 0x4, scoped, tag = 'scoped memory for unimodal_detection_forward.1']
    #allocation10 [shape = 'u8[131072]{0}', space=vmem, size = 0x20000, scoped, tag = 'input window, operand 5, single buffered']
    #allocation11 [shape = 'u8[1024]{0}', space=vmem, size = 0x400, scoped, tag = 'input window, operand 7, single buffered']
    #allocation12 [shape = 's32[1]{0}', space=sflag, size = 0x4, scoped, tag = 'scoped memory for unimodal_detection_forward.1']
    #allocation13 [shape = 'u8[8192]{0}', space=vmem, size = 0x2000, scoped, tag = 'output window, operand 0']
    #allocation14 [shape = 'u8[8192]{0}', space=vmem, size = 0x2000, scoped, tag = 'output window, operand 1']
    #allocation15 [shape = 's32[2]{0}', space=sflag, size = 0x8, scoped, tag = 'scoped memory for unimodal_detection_forward.1']
    %15 = vsyncpa [#allocation3], 0
    %s16 = scalar_lea.sflag [#allocation3], 1
    %17 = vsyncpa %s16, 0
    %18 = vsyncpa [#allocation6], 0
    %s19 = scalar_lea.sflag [#allocation6], 1
    %20 = vsyncpa %s19, 0
    %21 = vsyncpa [#allocation9], 0
    %22 = vsyncpa [#allocation12], 0
    %23 = vsyncpa [#allocation4], 0
    %s24 = scalar_lea.sflag [#allocation4], 1
    %25 = vsyncpa %s24, 0
    %26 = vsyncpa [#allocation15], 0
    %s27 = scalar_lea.sflag [#allocation15], 1
    %28 = vsyncpa %s27, 0
    loop: start=0, step=1, limit=4
    $region2: #{unimodal_detection_forward.1} parent=1 // loop_pre_header
      _
    $region3: #{unimodal_detection_forward.1} parent=1 // loop_header
      %s30 = sphi 0, %s34
      %p31 = scmp.ge.s32.totalorder %s30, 4
      %s40 = sphi 0, %s42
      %s43 = sphi 0, %s40
      %s44 = sphi 0, %s43
      %s60 = sphi 0, %s44
      %s66 = sphi 0, %s68
      %s69 = sphi 0, %s66
      %s70 = sphi 0, %s69
      %s86 = sphi 0, %s70
      %s90 = sphi 0, %s90
      %s92 = sphi 0, %s90
      %s93 = sphi 0, %s92
      %s107 = sphi 0, %s93
      %s111 = sphi 0, %s111
      %s113 = sphi 0, %s111
      %s114 = sphi 0, %s113
      %s128 = sphi 0, %s114
      %s132 = sphi 0, %s132
      %s134 = sphi 0, %s132
      %s135 = sphi 0, %s134
      %s149 = sphi 0, %s135
      %s153 = sphi 0, %s153
      %s155 = sphi 0, %s153
      %s156 = sphi 0, %s155
      %s170 = sphi 0, %s156
      %s174 = sphi 0, %s174
      %s176 = sphi 0, %s174
      %s177 = sphi 0, %s176
      %s191 = sphi 0, %s177
      %s195 = sphi 0, %s195
      %s197 = sphi 0, %s195
      %s198 = sphi 0, %s197
      %s212 = sphi 0, %s198
      %s218 = sphi 0, %s220
      %s221 = sphi 0, %s218
      %s222 = sphi 0, %s221
      %s238 = sphi 0, %s222
      %s244 = sphi 0, %s246
      %s247 = sphi 0, %s244
      %s248 = sphi 0, %s247
      %s264 = sphi 0, %s248
    $region4: #{unimodal_detection_forward.1} parent=1 // loop_header_branch
      %33 = sbr.rel (%p31) target = $region8
    $region5: #{unimodal_detection_forward.1} parent=1 // loop_body
      %s35 = ssub.s32 %s30, 1
      %s36 = ssub.s32 %s30, 2
      %s37 = sadd.s32 %s30, 1
      %s38 = ssub.s32 %s30, %s37
      %p39 = scmp.eq.s32.totalorder %s38, 0
      %s41 = sadd.s32 %s40, 1
      %s42 = scalar_select %p39, %s40, %s41
      %p45 = pneg %p39
      %p46 = scmp.eq.s32.totalorder %s30, 1
      %p47 = por %p45, %p46
      %p48 = scmp.ne.s32.totalorder %s40, %s43
      %p49 = scmp.eq.s32.totalorder %s30, 0
      %p50 = por %p48, %p49
      %p51 = scmp.ne.s32.totalorder %s40, %s43
      %p52 = scmp.eq.s32.totalorder %s35, 1
      %p53 = por %p51, %p52
      %p54 = scmp.ne.s32.totalorder %s43, %s44
      %p55 = scmp.eq.s32.totalorder %s35, 0
      %p56 = por %p54, %p55
      %p57 = scmp.ne.s32.totalorder %s43, %s44
      %p58 = scmp.eq.s32.totalorder %s36, 1
      %p59 = por %p57, %p58
      %p61 = scmp.ne.s32.totalorder %s44, %s60
      %p62 = scmp.eq.s32.totalorder %s36, 0
      %p63 = por %p61, %p62
      %s64 = ssub.s32 %s30, %s37
      %p65 = scmp.eq.s32.totalorder %s64, 0
      %s67 = sadd.s32 %s66, 1
      %s68 = scalar_select %p65, %s66, %s67
      %p71 = pneg %p65
      %p72 = scmp.eq.s32.totalorder %s30, 1
      %p73 = por %p71, %p72
      %p74 = scmp.ne.s32.totalorder %s66, %s69
      %p75 = scmp.eq.s32.totalorder %s30, 0
      %p76 = por %p74, %p75
      %p77 = scmp.ne.s32.totalorder %s66, %s69
      %p78 = scmp.eq.s32.totalorder %s35, 1
      %p79 = por %p77, %p78
      %p80 = scmp.ne.s32.totalorder %s69, %s70
      %p81 = scmp.eq.s32.totalorder %s35, 0
      %p82 = por %p80, %p81
      %p83 = scmp.ne.s32.totalorder %s69, %s70
      %p84 = scmp.eq.s32.totalorder %s36, 1
      %p85 = por %p83, %p84
      %p87 = scmp.ne.s32.totalorder %s70, %s86
      %p88 = scmp.eq.s32.totalorder %s36, 0
      %p89 = por %p87, %p88
      %s91 = sadd.s32 %s90, 1
      %p94 = scmp.eq.s32.totalorder %s30, 1
      %p95 = scmp.ne.s32.totalorder %s90, %s92
      %p96 = scmp.eq.s32.totalorder %s30, 0
      %p97 = por %p95, %p96
      %p98 = scmp.ne.s32.totalorder %s90, %s92
      %p99 = scmp.eq.s32.totalorder %s35, 1
      %p100 = por %p98, %p99
      %p101 = scmp.ne.s32.totalorder %s92, %s93
      %p102 = scmp.eq.s32.totalorder %s35, 0
      %p103 = por %p101, %p102
      %p104 = scmp.ne.s32.totalorder %s92, %s93
      %p105 = scmp.eq.s32.totalorder %s36, 1
      %p106 = por %p104, %p105
      %p108 = scmp.ne.s32.totalorder %s93, %s107
      %p109 = scmp.eq.s32.totalorder %s36, 0
      %p110 = por %p108, %p109
      %s112 = sadd.s32 %s111, 1
      %p115 = scmp.eq.s32.totalorder %s30, 1
      %p116 = scmp.ne.s32.totalorder %s111, %s113
      %p117 = scmp.eq.s32.totalorder %s30, 0
      %p118 = por %p116, %p117
      %p119 = scmp.ne.s32.totalorder %s111, %s113
      %p120 = scmp.eq.s32.totalorder %s35, 1
      %p121 = por %p119, %p120
      %p122 = scmp.ne.s32.totalorder %s113, %s114
      %p123 = scmp.eq.s32.totalorder %s35, 0
      %p124 = por %p122, %p123
      %p125 = scmp.ne.s32.totalorder %s113, %s114
      %p126 = scmp.eq.s32.totalorder %s36, 1
      %p127 = por %p125, %p126
      %p129 = scmp.ne.s32.totalorder %s114, %s128
      %p130 = scmp.eq.s32.totalorder %s36, 0
      %p131 = por %p129, %p130
      %s133 = sadd.s32 %s132, 1
      %p136 = scmp.eq.s32.totalorder %s30, 1
      %p137 = scmp.ne.s32.totalorder %s132, %s134
      %p138 = scmp.eq.s32.totalorder %s30, 0
      %p139 = por %p137, %p138
      %p140 = scmp.ne.s32.totalorder %s132, %s134
      %p141 = scmp.eq.s32.totalorder %s35, 1
      %p142 = por %p140, %p141
      %p143 = scmp.ne.s32.totalorder %s134, %s135
      %p144 = scmp.eq.s32.totalorder %s35, 0
      %p145 = por %p143, %p144
      %p146 = scmp.ne.s32.totalorder %s134, %s135
      %p147 = scmp.eq.s32.totalorder %s36, 1
      %p148 = por %p146, %p147
      %p150 = scmp.ne.s32.totalorder %s135, %s149
      %p151 = scmp.eq.s32.totalorder %s36, 0
      %p152 = por %p150, %p151
      %s154 = sadd.s32 %s153, 1
      %p157 = scmp.eq.s32.totalorder %s30, 1
      %p158 = scmp.ne.s32.totalorder %s153, %s155
      %p159 = scmp.eq.s32.totalorder %s30, 0
      %p160 = por %p158, %p159
      %p161 = scmp.ne.s32.totalorder %s153, %s155
      %p162 = scmp.eq.s32.totalorder %s35, 1
      %p163 = por %p161, %p162
      %p164 = scmp.ne.s32.totalorder %s155, %s156
      %p165 = scmp.eq.s32.totalorder %s35, 0
      %p166 = por %p164, %p165
      %p167 = scmp.ne.s32.totalorder %s155, %s156
      %p168 = scmp.eq.s32.totalorder %s36, 1
      %p169 = por %p167, %p168
      %p171 = scmp.ne.s32.totalorder %s156, %s170
      %p172 = scmp.eq.s32.totalorder %s36, 0
      %p173 = por %p171, %p172
      %s175 = sadd.s32 %s174, 1
      %p178 = scmp.eq.s32.totalorder %s30, 1
      %p179 = scmp.ne.s32.totalorder %s174, %s176
      %p180 = scmp.eq.s32.totalorder %s30, 0
      %p181 = por %p179, %p180
      %p182 = scmp.ne.s32.totalorder %s174, %s176
      %p183 = scmp.eq.s32.totalorder %s35, 1
      %p184 = por %p182, %p183
      %p185 = scmp.ne.s32.totalorder %s176, %s177
      %p186 = scmp.eq.s32.totalorder %s35, 0
      %p187 = por %p185, %p186
      %p188 = scmp.ne.s32.totalorder %s176, %s177
      %p189 = scmp.eq.s32.totalorder %s36, 1
      %p190 = por %p188, %p189
      %p192 = scmp.ne.s32.totalorder %s177, %s191
      %p193 = scmp.eq.s32.totalorder %s36, 0
      %p194 = por %p192, %p193
      %s196 = sadd.s32 %s195, 1
      %p199 = scmp.eq.s32.totalorder %s30, 1
      %p200 = scmp.ne.s32.totalorder %s195, %s197
      %p201 = scmp.eq.s32.totalorder %s30, 0
      %p202 = por %p200, %p201
      %p203 = scmp.ne.s32.totalorder %s195, %s197
      %p204 = scmp.eq.s32.totalorder %s35, 1
      %p205 = por %p203, %p204
      %p206 = scmp.ne.s32.totalorder %s197, %s198
      %p207 = scmp.eq.s32.totalorder %s35, 0
      %p208 = por %p206, %p207
      %p209 = scmp.ne.s32.totalorder %s197, %s198
      %p210 = scmp.eq.s32.totalorder %s36, 1
      %p211 = por %p209, %p210
      %p213 = scmp.ne.s32.totalorder %s198, %s212
      %p214 = scmp.eq.s32.totalorder %s36, 0
      %p215 = por %p213, %p214
      %s216 = ssub.s32 %s30, %s37
      %p217 = scmp.eq.s32.totalorder %s216, 0
      %s219 = sadd.s32 %s218, 1
      %s220 = scalar_select %p217, %s218, %s219
      %p223 = pneg %p217
      %p224 = scmp.eq.s32.totalorder %s30, 1
      %p225 = por %p223, %p224
      %p226 = scmp.ne.s32.totalorder %s218, %s221
      %p227 = scmp.eq.s32.totalorder %s30, 0
      %p228 = por %p226, %p227
      %p229 = scmp.ne.s32.totalorder %s218, %s221
      %p230 = scmp.eq.s32.totalorder %s35, 1
      %p231 = por %p229, %p230
      %p232 = scmp.ne.s32.totalorder %s221, %s222
      %p233 = scmp.eq.s32.totalorder %s35, 0
      %p234 = por %p232, %p233
      %p235 = scmp.ne.s32.totalorder %s221, %s222
      %p236 = scmp.eq.s32.totalorder %s36, 1
      %p237 = por %p235, %p236
      %p239 = scmp.ne.s32.totalorder %s222, %s238
      %p240 = scmp.eq.s32.totalorder %s36, 0
      %p241 = por %p239, %p240
      %s242 = ssub.s32 %s30, %s37
      %p243 = scmp.eq.s32.totalorder %s242, 0
      %s245 = sadd.s32 %s244, 1
      %s246 = scalar_select %p243, %s244, %s245
      %p249 = pneg %p243
      %p250 = scmp.eq.s32.totalorder %s30, 1
      %p251 = por %p249, %p250
      %p252 = scmp.ne.s32.totalorder %s244, %s247
      %p253 = scmp.eq.s32.totalorder %s30, 0
      %p254 = por %p252, %p253
      %p255 = scmp.ne.s32.totalorder %s244, %s247
      %p256 = scmp.eq.s32.totalorder %s35, 1
      %p257 = por %p255, %p256
      %p258 = scmp.ne.s32.totalorder %s247, %s248
      %p259 = scmp.eq.s32.totalorder %s35, 0
      %p260 = por %p258, %p259
      %p261 = scmp.ne.s32.totalorder %s247, %s248
      %p262 = scmp.eq.s32.totalorder %s36, 1
      %p263 = por %p261, %p262
      %p265 = scmp.ne.s32.totalorder %s248, %s264
      %p266 = scmp.eq.s32.totalorder %s36, 0
      %p267 = por %p265, %p266
      %p268 = scmp.le.s32.totalorder 1, %s30
      %p269 = scmp.lt.s32.totalorder %s30, 3
      %p270 = pnand %p268, %p269
      %p271 = pneg %p270
      // Predicated region
      $region9: #{unimodal_detection_forward.1} parent=5 // pred_check
        _
      $region10: #{unimodal_detection_forward.1} parent=5 // pred_check_branch
        %273 = sbr.rel (%p270) target = $region12
      $region11: #{unimodal_detection_forward.1} parent=5 // pred_region
        %s274 = ssub.s32 %s30, 1
        // Predicated region
        $region13: #{unimodal_detection_forward.1} parent=11 // pred_check
          %p275 = pneg %p103
        $region14: #{unimodal_detection_forward.1} parent=11 // pred_check_branch
          %277 = sbr.rel (%p275) target = $region16
        $region15: #{unimodal_detection_forward.1} parent=11 // pred_region
          %s279 = ssub.s32 32768, 32768
          %280 = vsyncadd [#allocation6], %s279
          %s281 = sshll.u32 [#allocation7], 4
          %s282 = int_to_ptr.vmem [resolvable:$true] %s281
          %287 = dma.hbm_to_vmem [thread:$0]  %s2, 32768, %s282, [#allocation6], 128, 128, 8
        $region16: #{unimodal_detection_forward.1} parent=11 // pred_fallthru
          _
        // Predicated region
        $region17: #{unimodal_detection_forward.1} parent=11 // pred_check
          %p288 = pneg %p124
        $region18: #{unimodal_detection_forward.1} parent=11 // pred_check_branch
          %290 = sbr.rel (%p288) target = $region20
        $region19: #{unimodal_detection_forward.1} parent=11 // pred_region
          _
        $region20: #{unimodal_detection_forward.1} parent=11 // pred_fallthru
          _
        // Predicated region
        $region21: #{unimodal_detection_forward.1} parent=11 // pred_check
          %p291 = pneg %p145
        $region22: #{unimodal_detection_forward.1} parent=11 // pred_check_branch
          %293 = sbr.rel (%p291) target = $region24
        $region23: #{unimodal_detection_forward.1} parent=11 // pred_region
          %s295 = ssub.s32 32, 32
          %296 = vsyncadd [#allocation9], %s295
          %s297 = sshll.u32 [#allocation8], 4
          %s298 = int_to_ptr.vmem [resolvable:$true] %s297
          %303 = dma.hbm_to_vmem [thread:$0]  %s4, 32, %s298, [#allocation9], 16, 16, 1
        $region24: #{unimodal_detection_forward.1} parent=11 // pred_fallthru
          _
        // Predicated region
        $region25: #{unimodal_detection_forward.1} parent=11 // pred_check
          %p304 = pneg %p166
        $region26: #{unimodal_detection_forward.1} parent=11 // pred_check_branch
          %306 = sbr.rel (%p304) target = $region28
        $region27: #{unimodal_detection_forward.1} parent=11 // pred_region
          %s308 = ssub.s32 4096, 4096
          %309 = vsyncadd [#allocation9], %s308
          %s310 = sshll.u32 [#allocation10], 4
          %s311 = int_to_ptr.vmem [resolvable:$true] %s310
          %316 = dma.hbm_to_vmem [thread:$0]  %s5, 4096, %s311, [#allocation9], 128, 128, 8
        $region28: #{unimodal_detection_forward.1} parent=11 // pred_fallthru
          _
        // Predicated region
        $region29: #{unimodal_detection_forward.1} parent=11 // pred_check
          %p317 = pneg %p187
        $region30: #{unimodal_detection_forward.1} parent=11 // pred_check_branch
          %319 = sbr.rel (%p317) target = $region32
        $region31: #{unimodal_detection_forward.1} parent=11 // pred_region
          _
        $region32: #{unimodal_detection_forward.1} parent=11 // pred_fallthru
          _
        // Predicated region
        $region33: #{unimodal_detection_forward.1} parent=11 // pred_check
          %p320 = pneg %p208
        $region34: #{unimodal_detection_forward.1} parent=11 // pred_check_branch
          %322 = sbr.rel (%p320) target = $region36
        $region35: #{unimodal_detection_forward.1} parent=11 // pred_region
          %s324 = ssub.s32 32, 32
          %325 = vsyncadd [#allocation12], %s324
          %s326 = sshll.u32 [#allocation11], 4
          %s327 = int_to_ptr.vmem [resolvable:$true] %s326
          %332 = dma.hbm_to_vmem [thread:$0]  %s7, 32, %s327, [#allocation12], 16, 16, 1
        $region36: #{unimodal_detection_forward.1} parent=11 // pred_fallthru
          _
      $region12: #{unimodal_detection_forward.1} parent=5 // pred_fallthru
        _
      %p333 = scmp.lt.s32.totalorder %s30, 2
      // Predicated region
      $region37: #{unimodal_detection_forward.1} parent=5 // pred_check
        %p334 = pneg %p333
      $region38: #{unimodal_detection_forward.1} parent=5 // pred_check_branch
        %336 = sbr.rel (%p334) target = $region40
      $region39: #{unimodal_detection_forward.1} parent=5 // pred_region
        // Predicated region
        $region41: #{unimodal_detection_forward.1} parent=39 // pred_check
          %p337 = pneg %p50
        $region42: #{unimodal_detection_forward.1} parent=39 // pred_check_branch
          %339 = sbr.rel (%p337) target = $region44
        $region43: #{unimodal_detection_forward.1} parent=39 // pred_region
          %s340 = sand.u32 %s40, 1
          %s341 = scalar_lea.sflag [#allocation3], %s340
          %s342 = sand.u32 %s40, 1
          %s343 = smul.addr %s342, 64
          %s344 = scalar_lea.vmem [#allocation2], %s343
          %s346 = ssub.s32 1024, 1024
          %347 = vsyncadd %s341, %s346
          %s348 = smul.addr %s30, 8
          %s349 = smul.addr %s348, 128
          %s350 = scalar_lea.hbm %s0, %s349
          %s352 = sshll.u32 %s344, 4
          %s353 = int_to_ptr.vmem [resolvable:$true] %s352
          %355 = dma.hbm_to_vmem [thread:$0]  %s350, 1024, %s353, %s341
        $region44: #{unimodal_detection_forward.1} parent=39 // pred_fallthru
          _
        // Predicated region
        $region45: #{unimodal_detection_forward.1} parent=39 // pred_check
          %p356 = pneg %p76
        $region46: #{unimodal_detection_forward.1} parent=39 // pred_check_branch
          %358 = sbr.rel (%p356) target = $region48
        $region47: #{unimodal_detection_forward.1} parent=39 // pred_region
          %s359 = sand.u32 %s30, 1
          %s360 = scalar_lea.sflag [#allocation6], %s359
          %s361 = sand.u32 %s66, 1
          %s362 = smul.addr %s361, 64
          %s363 = scalar_lea.vmem [#allocation5], %s362
          %s365 = ssub.s32 1024, 1024
          %366 = vsyncadd %s360, %s365
          %s367 = smul.addr %s30, 8
          %s368 = smul.addr %s367, 128
          %s369 = scalar_lea.hbm %s1, %s368
          %s371 = sshll.u32 %s363, 4
          %s372 = int_to_ptr.vmem [resolvable:$true] %s371
          %374 = dma.hbm_to_vmem [thread:$0]  %s369, 1024, %s372, %s360
        $region48: #{unimodal_detection_forward.1} parent=39 // pred_fallthru
          _
      $region40: #{unimodal_detection_forward.1} parent=5 // pred_fallthru
        _
      %p375 = scmp.le.s32.totalorder 1, %s30
      %p376 = scmp.lt.s32.totalorder %s30, 3
      %p377 = pnand %p375, %p376
      %p378 = pneg %p377
      // Predicated region
      $region49: #{unimodal_detection_forward.1} parent=5 // pred_check
        _
      $region50: #{unimodal_detection_forward.1} parent=5 // pred_check_branch
        %380 = sbr.rel (%p377) target = $region52
      $region51: #{unimodal_detection_forward.1} parent=5 // pred_region
        %s381 = ssub.s32 %s30, 1
        %s382 = sand.u32 %s43, 1
        %s383 = scalar_lea.sflag [#allocation3], %s382
        %s384 = sand.u32 %s43, 1
        %s385 = smul.addr %s384, 64
        %s386 = scalar_lea.vmem [#allocation2], %s385
        // Predicated region
        $region53: #{unimodal_detection_forward.1} parent=51 // pred_check
          %p387 = pneg %p56
        $region54: #{unimodal_detection_forward.1} parent=51 // pred_check_branch
          %389 = sbr.rel (%p387) target = $region56
        $region55: #{unimodal_detection_forward.1} parent=51 // pred_region
          %390 = dma.done %s383, 1024
        $region56: #{unimodal_detection_forward.1} parent=51 // pred_fallthru
          _
        %s391 = sand.u32 %s35, 1
        %s392 = scalar_lea.sflag [#allocation6], %s391
        %s393 = sand.u32 %s69, 1
        %s394 = smul.addr %s393, 64
        %s395 = scalar_lea.vmem [#allocation5], %s394
        // Predicated region
        $region57: #{unimodal_detection_forward.1} parent=51 // pred_check
          %p396 = pneg %p82
        $region58: #{unimodal_detection_forward.1} parent=51 // pred_check_branch
          %398 = sbr.rel (%p396) target = $region60
        $region59: #{unimodal_detection_forward.1} parent=51 // pred_region
          %399 = dma.done %s392, 1024
        $region60: #{unimodal_detection_forward.1} parent=51 // pred_fallthru
          _
        // Predicated region
        $region61: #{unimodal_detection_forward.1} parent=51 // pred_check
          %p400 = pneg %p103
        $region62: #{unimodal_detection_forward.1} parent=51 // pred_check_branch
          %402 = sbr.rel (%p400) target = $region64
        $region63: #{unimodal_detection_forward.1} parent=51 // pred_region
          %403 = dma.done [#allocation6], 32768
        $region64: #{unimodal_detection_forward.1} parent=51 // pred_fallthru
          _
        // Predicated region
        $region65: #{unimodal_detection_forward.1} parent=51 // pred_check
          %p404 = pneg %p145
        $region66: #{unimodal_detection_forward.1} parent=51 // pred_check_branch
          %406 = sbr.rel (%p404) target = $region68
        $region67: #{unimodal_detection_forward.1} parent=51 // pred_region
          %407 = dma.done [#allocation9], 32
        $region68: #{unimodal_detection_forward.1} parent=51 // pred_fallthru
          _
        // Predicated region
        $region69: #{unimodal_detection_forward.1} parent=51 // pred_check
          %p408 = pneg %p166
        $region70: #{unimodal_detection_forward.1} parent=51 // pred_check_branch
          %410 = sbr.rel (%p408) target = $region72
        $region71: #{unimodal_detection_forward.1} parent=51 // pred_region
          %411 = dma.done [#allocation9], 4096
        $region72: #{unimodal_detection_forward.1} parent=51 // pred_fallthru
          _
        // Predicated region
        $region73: #{unimodal_detection_forward.1} parent=51 // pred_check
          %p412 = pneg %p208
        $region74: #{unimodal_detection_forward.1} parent=51 // pred_check_branch
          %414 = sbr.rel (%p412) target = $region76
        $region75: #{unimodal_detection_forward.1} parent=51 // pred_region
          %415 = dma.done [#allocation12], 32
        $region76: #{unimodal_detection_forward.1} parent=51 // pred_fallthru
          _
        %s416 = sand.u32 %s43, 1
        %s417 = scalar_lea.sflag [#allocation3], %s416
        %s418 = sand.u32 %s43, 1
        %s419 = smul.addr %s418, 64
        %s420 = scalar_lea.vmem [#allocation2], %s419
        %p421 = pneg %p56
        %p422 = pneg %p53
        %s423 = sand.u32 %s35, 1
        %s424 = scalar_lea.sflag [#allocation6], %s423
        %s425 = sand.u32 %s69, 1
        %s426 = smul.addr %s425, 64
        %s427 = scalar_lea.vmem [#allocation5], %s426
        %p428 = pneg %p82
        %p429 = pneg %p79
        %p430 = pneg %p103
        %p431 = pneg %p100
        %p432 = pneg %p124
        %p433 = pneg %p121
        %p434 = pneg %p145
        %p435 = pneg %p142
        %p436 = pneg %p166
        %p437 = pneg %p163
        %p438 = pneg %p187
        %p439 = pneg %p184
        %p440 = pneg %p208
        %p441 = pneg %p205
        %p442 = pneg %p234
        %p443 = pneg %p231
        %s444 = sand.u32 %s221, 1
        %s445 = scalar_lea.sflag [#allocation4], %s444
        %s446 = sand.u32 %s221, 1
        %s447 = smul.addr %s446, 8
        %s448 = scalar_lea.vmem [#allocation13], %s447
        %p449 = pneg %p260
        %p450 = pneg %p257
        %s451 = sand.u32 %s247, 1
        %s452 = scalar_lea.sflag [#allocation15], %s451
        %s453 = sand.u32 %s247, 1
        %s454 = smul.addr %s453, 8
        %s455 = scalar_lea.vmem [#allocation14], %s454
        %v456 = vld [vmem:[%s386] sm:$0xff]
        %v457 = vld [vmem:[%s386 + $0x8] sm:$0xff]
        %v458 = vld [vmem:[%s386 + $0x10] sm:$0xff]
        %v459 = vld [vmem:[%s386 + $0x18] sm:$0xff]
        %v460 = vld [vmem:[%s386 + $0x20] sm:$0xff]
        %v461 = vld [vmem:[%s386 + $0x28] sm:$0xff]
        %v462 = vld [vmem:[%s386 + $0x30] sm:$0xff]
        %v463 = vld [vmem:[%s386 + $0x38] sm:$0xff]
        %v464 = vld [vmem:[#allocation7] sm:$0xff]
        %v465 = vld [vmem:[#allocation7 + $0x8] sm:$0xff]
        %v466 = vld [vmem:[#allocation7 + $0x10] sm:$0xff]
        %v467 = vld [vmem:[#allocation7 + $0x18] sm:$0xff]
        %v468 = vld [vmem:[#allocation7 + $0x20] sm:$0xff]
        %v469 = vld [vmem:[#allocation7 + $0x28] sm:$0xff]
        %v470 = vld [vmem:[#allocation7 + $0x30] sm:$0xff]
        %v471 = vld [vmem:[#allocation7 + $0x38] sm:$0xff]
        %v472 = vld [vmem:[#allocation7 + $0x40] sm:$0xff]
        %v473 = vld [vmem:[#allocation7 + $0x48] sm:$0xff]
        %v474 = vld [vmem:[#allocation7 + $0x50] sm:$0xff]
        %v475 = vld [vmem:[#allocation7 + $0x58] sm:$0xff]
        %v476 = vld [vmem:[#allocation7 + $0x60] sm:$0xff]
        %v477 = vld [vmem:[#allocation7 + $0x68] sm:$0xff]
        %v478 = vld [vmem:[#allocation7 + $0x70] sm:$0xff]
        %v479 = vld [vmem:[#allocation7 + $0x78] sm:$0xff]
        %v480 = vld [vmem:[#allocation7 + $0x80] sm:$0xff]
        %v481 = vld [vmem:[#allocation7 + $0x88] sm:$0xff]
        %v482 = vld [vmem:[#allocation7 + $0x90] sm:$0xff]
        %v483 = vld [vmem:[#allocation7 + $0x98] sm:$0xff]
        %v484 = vld [vmem:[#allocation7 + $0xa0] sm:$0xff]
        %v485 = vld [vmem:[#allocation7 + $0xa8] sm:$0xff]
        %v486 = vld [vmem:[#allocation7 + $0xb0] sm:$0xff]
        %v487 = vld [vmem:[#allocation7 + $0xb8] sm:$0xff]
        %v488 = vld [vmem:[#allocation7 + $0xc0] sm:$0xff]
        %v489 = vld [vmem:[#allocation7 + $0xc8] sm:$0xff]
        %v490 = vld [vmem:[#allocation7 + $0xd0] sm:$0xff]
        %v491 = vld [vmem:[#allocation7 + $0xd8] sm:$0xff]
        %v492 = vld [vmem:[#allocation7 + $0xe0] sm:$0xff]
        %v493 = vld [vmem:[#allocation7 + $0xe8] sm:$0xff]
        %v494 = vld [vmem:[#allocation7 + $0xf0] sm:$0xff]
        %v495 = vld [vmem:[#allocation7 + $0xf8] sm:$0xff]
        %v496 = vld [vmem:[#allocation7 + $0x100] sm:$0xff]
        %v497 = vld [vmem:[#allocation7 + $0x108] sm:$0xff]
        %v498 = vld [vmem:[#allocation7 + $0x110] sm:$0xff]
        %v499 = vld [vmem:[#allocation7 + $0x118] sm:$0xff]
        %v500 = vld [vmem:[#allocation7 + $0x120] sm:$0xff]
        %v501 = vld [vmem:[#allocation7 + $0x128] sm:$0xff]
        %v502 = vld [vmem:[#allocation7 + $0x130] sm:$0xff]
        %v503 = vld [vmem:[#allocation7 + $0x138] sm:$0xff]
        %v504 = vld [vmem:[#allocation7 + $0x140] sm:$0xff]
        %v505 = vld [vmem:[#allocation7 + $0x148] sm:$0xff]
        %v506 = vld [vmem:[#allocation7 + $0x150] sm:$0xff]
        %v507 = vld [vmem:[#allocation7 + $0x158] sm:$0xff]
        %v508 = vld [vmem:[#allocation7 + $0x160] sm:$0xff]
        %v509 = vld [vmem:[#allocation7 + $0x168] sm:$0xff]
        %v510 = vld [vmem:[#allocation7 + $0x170] sm:$0xff]
        %v511 = vld [vmem:[#allocation7 + $0x178] sm:$0xff]
        %v512 = vld [vmem:[#allocation7 + $0x180] sm:$0xff]
        %v513 = vld [vmem:[#allocation7 + $0x188] sm:$0xff]
        %v514 = vld [vmem:[#allocation7 + $0x190] sm:$0xff]
        %v515 = vld [vmem:[#allocation7 + $0x198] sm:$0xff]
        %v516 = vld [vmem:[#allocation7 + $0x1a0] sm:$0xff]
        %v517 = vld [vmem:[#allocation7 + $0x1a8] sm:$0xff]
        %v518 = vld [vmem:[#allocation7 + $0x1b0] sm:$0xff]
        %v519 = vld [vmem:[#allocation7 + $0x1b8] sm:$0xff]
        %v520 = vld [vmem:[#allocation7 + $0x1c0] sm:$0xff]
        %v521 = vld [vmem:[#allocation7 + $0x1c8] sm:$0xff]
        %v522 = vld [vmem:[#allocation7 + $0x1d0] sm:$0xff]
        %v523 = vld [vmem:[#allocation7 + $0x1d8] sm:$0xff]
        %v524 = vld [vmem:[#allocation7 + $0x1e0] sm:$0xff]
        %v525 = vld [vmem:[#allocation7 + $0x1e8] sm:$0xff]
        %v526 = vld [vmem:[#allocation7 + $0x1f0] sm:$0xff]
        %v527 = vld [vmem:[#allocation7 + $0x1f8] sm:$0xff]
        %v528 = vld [vmem:[#allocation7 + $0x200] sm:$0xff]
        %v529 = vld [vmem:[#allocation7 + $0x208] sm:$0xff]
        %v530 = vld [vmem:[#allocation7 + $0x210] sm:$0xff]
        %v531 = vld [vmem:[#allocation7 + $0x218] sm:$0xff]
        %v532 = vld [vmem:[#allocation7 + $0x220] sm:$0xff]
        %v533 = vld [vmem:[#allocation7 + $0x228] sm:$0xff]
        %v534 = vld [vmem:[#allocation7 + $0x230] sm:$0xff]
        %v535 = vld [vmem:[#allocation7 + $0x238] sm:$0xff]
        %v536 = vld [vmem:[#allocation7 + $0x240] sm:$0xff]
        %v537 = vld [vmem:[#allocation7 + $0x248] sm:$0xff]
        %v538 = vld [vmem:[#allocation7 + $0x250] sm:$0xff]
        %v539 = vld [vmem:[#allocation7 + $0x258] sm:$0xff]
        %v540 = vld [vmem:[#allocation7 + $0x260] sm:$0xff]
        %v541 = vld [vmem:[#allocation7 + $0x268] sm:$0xff]
        %v542 = vld [vmem:[#allocation7 + $0x270] sm:$0xff]
        %v543 = vld [vmem:[#allocation7 + $0x278] sm:$0xff]
        %v544 = vld [vmem:[#allocation7 + $0x280] sm:$0xff]
        %v545 = vld [vmem:[#allocation7 + $0x288] sm:$0xff]
        %v546 = vld [vmem:[#allocation7 + $0x290] sm:$0xff]
        %v547 = vld [vmem:[#allocation7 + $0x298] sm:$0xff]
        %v548 = vld [vmem:[#allocation7 + $0x2a0] sm:$0xff]
        %v549 = vld [vmem:[#allocation7 + $0x2a8] sm:$0xff]
        %v550 = vld [vmem:[#allocation7 + $0x2b0] sm:$0xff]
        %v551 = vld [vmem:[#allocation7 + $0x2b8] sm:$0xff]
        %v552 = vld [vmem:[#allocation7 + $0x2c0] sm:$0xff]
        %v553 = vld [vmem:[#allocation7 + $0x2c8] sm:$0xff]
        %v554 = vld [vmem:[#allocation7 + $0x2d0] sm:$0xff]
        %v555 = vld [vmem:[#allocation7 + $0x2d8] sm:$0xff]
        %v556 = vld [vmem:[#allocation7 + $0x2e0] sm:$0xff]
        %v557 = vld [vmem:[#allocation7 + $0x2e8] sm:$0xff]
        %v558 = vld [vmem:[#allocation7 + $0x2f0] sm:$0xff]
        %v559 = vld [vmem:[#allocation7 + $0x2f8] sm:$0xff]
        %v560 = vld [vmem:[#allocation7 + $0x300] sm:$0xff]
        %v561 = vld [vmem:[#allocation7 + $0x308] sm:$0xff]
        %v562 = vld [vmem:[#allocation7 + $0x310] sm:$0xff]
        %v563 = vld [vmem:[#allocation7 + $0x318] sm:$0xff]
        %v564 = vld [vmem:[#allocation7 + $0x320] sm:$0xff]
        %v565 = vld [vmem:[#allocation7 + $0x328] sm:$0xff]
        %v566 = vld [vmem:[#allocation7 + $0x330] sm:$0xff]
        %v567 = vld [vmem:[#allocation7 + $0x338] sm:$0xff]
        %v568 = vld [vmem:[#allocation7 + $0x340] sm:$0xff]
        %v569 = vld [vmem:[#allocation7 + $0x348] sm:$0xff]
        %v570 = vld [vmem:[#allocation7 + $0x350] sm:$0xff]
        %v571 = vld [vmem:[#allocation7 + $0x358] sm:$0xff]
        %v572 = vld [vmem:[#allocation7 + $0x360] sm:$0xff]
        %v573 = vld [vmem:[#allocation7 + $0x368] sm:$0xff]
        %v574 = vld [vmem:[#allocation7 + $0x370] sm:$0xff]
        %v575 = vld [vmem:[#allocation7 + $0x378] sm:$0xff]
        %v576 = vld [vmem:[#allocation7 + $0x380] sm:$0xff]
        %v577 = vld [vmem:[#allocation7 + $0x388] sm:$0xff]
        %v578 = vld [vmem:[#allocation7 + $0x390] sm:$0xff]
        %v579 = vld [vmem:[#allocation7 + $0x398] sm:$0xff]
        %v580 = vld [vmem:[#allocation7 + $0x3a0] sm:$0xff]
        %v581 = vld [vmem:[#allocation7 + $0x3a8] sm:$0xff]
        %v582 = vld [vmem:[#allocation7 + $0x3b0] sm:$0xff]
        %v583 = vld [vmem:[#allocation7 + $0x3b8] sm:$0xff]
        %v584 = vld [vmem:[#allocation7 + $0x3c0] sm:$0xff]
        %v585 = vld [vmem:[#allocation7 + $0x3c8] sm:$0xff]
        %v586 = vld [vmem:[#allocation7 + $0x3d0] sm:$0xff]
        %v587 = vld [vmem:[#allocation7 + $0x3d8] sm:$0xff]
        %v588 = vld [vmem:[#allocation7 + $0x3e0] sm:$0xff]
        %v589 = vld [vmem:[#allocation7 + $0x3e8] sm:$0xff]
        %v590 = vld [vmem:[#allocation7 + $0x3f0] sm:$0xff]
        %v591 = vld [vmem:[#allocation7 + $0x3f8] sm:$0xff]
        %592 = vmatprep.subr.mxu0 0.0
        %593 = vmatpush1.msra.mxu0 %v479
        %594 = vmatprep.subr.mxu0 0.0
        %595 = vmatpush1.msra.mxu0 %v478
        %596 = vmatprep.subr.mxu0 0.0
        %597 = vmatpush1.msra.mxu0 %v477
        %598 = vmatprep.subr.mxu0 0.0
        %599 = vmatpush1.msra.mxu0 %v476
        %600 = vmatprep.subr.mxu0 0.0
        %601 = vmatpush1.msra.mxu0 %v475
        %602 = vmatprep.subr.mxu0 0.0
        %603 = vmatpush1.msra.mxu0 %v474
        %604 = vmatprep.subr.mxu0 0.0
        %605 = vmatpush1.msra.mxu0 %v473
        %606 = vmatprep.subr.mxu0 0.0
        %607 = vmatpush1.msra.mxu0 %v472
        %608 = vmatprep.subr.mxu0 0.0
        %609 = vmatpush1.msra.mxu0 %v471
        %610 = vmatprep.subr.mxu0 0.0
        %611 = vmatpush1.msra.mxu0 %v470
        %612 = vmatprep.subr.mxu0 0.0
        %613 = vmatpush1.msra.mxu0 %v469
        %614 = vmatprep.subr.mxu0 0.0
        %615 = vmatpush1.msra.mxu0 %v468
        %616 = vmatprep.subr.mxu0 0.0
        %617 = vmatpush1.msra.mxu0 %v467
        %618 = vmatprep.subr.mxu0 0.0
        %619 = vmatpush1.msra.mxu0 %v466
        %620 = vmatprep.subr.mxu0 0.0
        %621 = vmatpush1.msra.mxu0 %v465
        %622 = vmatprep.subr.mxu0 0.0
        %623 = vmatpush1.msra.mxu0 %v464
        %624 = vmatprep.subr.mxu0 0.0
        %625 = vmatpush2.msra.mxu0 %v495
        %626 = vmatprep.subr.mxu0 0.0
        %627 = vmatpush2.msra.mxu0 %v494
        %628 = vmatprep.subr.mxu0 0.0
        %629 = vmatpush2.msra.mxu0 %v493
        %630 = vmatprep.subr.mxu0 0.0
        %631 = vmatpush2.msra.mxu0 %v492
        %632 = vmatprep.subr.mxu0 0.0
        %633 = vmatpush2.msra.mxu0 %v491
        %634 = vmatprep.subr.mxu0 0.0
        %635 = vmatpush2.msra.mxu0 %v490
        %636 = vmatprep.subr.mxu0 0.0
        %637 = vmatpush2.msra.mxu0 %v489
        %638 = vmatprep.subr.mxu0 0.0
        %639 = vmatpush2.msra.mxu0 %v488
        %640 = vmatprep.subr.mxu0 0.0
        %641 = vmatpush2.msra.mxu0 %v487
        %642 = vmatprep.subr.mxu0 0.0
        %643 = vmatpush2.msra.mxu0 %v486
        %644 = vmatprep.subr.mxu0 0.0
        %645 = vmatpush2.msra.mxu0 %v485
        %646 = vmatprep.subr.mxu0 0.0
        %647 = vmatpush2.msra.mxu0 %v484
        %648 = vmatprep.subr.mxu0 0.0
        %649 = vmatpush2.msra.mxu0 %v483
        %650 = vmatprep.subr.mxu0 0.0
        %651 = vmatpush2.msra.mxu0 %v482
        %652 = vmatprep.subr.mxu0 0.0
        %653 = vmatpush2.msra.mxu0 %v481
        %654 = vmatprep.subr.mxu0 0.0
        %655 = vmatpush2.msra.mxu0 %v480
        %656 = vmatprep.mubr.f32.mxu0 %v457
        %657 = vmatmul.mubr.f32.gmra.mxu0 %v456
        %v658 = vpop.f32.mrf.mxu0
        %v659 = vadd.f32 0.0, %v658
        %v660 = vpop.f32.mrf.mxu0
        %661 = vdwg.mxu0
        %662 = vmatprep.subr.mxu0 0.0
        %663 = vmatpush1.msra.mxu0 %v511
        %664 = vmatprep.subr.mxu0 0.0
        %665 = vmatpush1.msra.mxu0 %v510
        %666 = vmatprep.subr.mxu0 0.0
        %667 = vmatpush1.msra.mxu0 %v509
        %668 = vmatprep.subr.mxu0 0.0
        %669 = vmatpush1.msra.mxu0 %v508
        %670 = vmatprep.subr.mxu0 0.0
        %671 = vmatpush1.msra.mxu0 %v507
        %672 = vmatprep.subr.mxu0 0.0
        %673 = vmatpush1.msra.mxu0 %v506
        %674 = vmatprep.subr.mxu0 0.0
        %675 = vmatpush1.msra.mxu0 %v505
        %676 = vmatprep.subr.mxu0 0.0
        %677 = vmatpush1.msra.mxu0 %v504
        %678 = vmatprep.subr.mxu0 0.0
        %679 = vmatpush1.msra.mxu0 %v503
        %680 = vmatprep.subr.mxu0 0.0
        %681 = vmatpush1.msra.mxu0 %v502
        %682 = vmatprep.subr.mxu0 0.0
        %683 = vmatpush1.msra.mxu0 %v501
        %684 = vmatprep.subr.mxu0 0.0
        %685 = vmatpush1.msra.mxu0 %v500
        %686 = vmatprep.subr.mxu0 0.0
        %687 = vmatpush1.msra.mxu0 %v499
        %688 = vmatprep.subr.mxu0 0.0
        %689 = vmatpush1.msra.mxu0 %v498
        %690 = vmatprep.subr.mxu0 0.0
        %691 = vmatpush1.msra.mxu0 %v497
        %692 = vmatprep.subr.mxu0 0.0
        %693 = vmatpush1.msra.mxu0 %v496
        %694 = vmatprep.subr.mxu0 0.0
        %695 = vmatpush2.msra.mxu0 %v527
        %696 = vmatprep.subr.mxu0 0.0
        %697 = vmatpush2.msra.mxu0 %v526
        %698 = vmatprep.subr.mxu0 0.0
        %699 = vmatpush2.msra.mxu0 %v525
        %700 = vmatprep.subr.mxu0 0.0
        %701 = vmatpush2.msra.mxu0 %v524
        %702 = vmatprep.subr.mxu0 0.0
        %703 = vmatpush2.msra.mxu0 %v523
        %704 = vmatprep.subr.mxu0 0.0
        %705 = vmatpush2.msra.mxu0 %v522
        %706 = vmatprep.subr.mxu0 0.0
        %707 = vmatpush2.msra.mxu0 %v521
        %708 = vmatprep.subr.mxu0 0.0
        %709 = vmatpush2.msra.mxu0 %v520
        %710 = vmatprep.subr.mxu0 0.0
        %711 = vmatpush2.msra.mxu0 %v519
        %712 = vmatprep.subr.mxu0 0.0
        %713 = vmatpush2.msra.mxu0 %v518
        %714 = vmatprep.subr.mxu0 0.0
        %715 = vmatpush2.msra.mxu0 %v517
        %716 = vmatprep.subr.mxu0 0.0
        %717 = vmatpush2.msra.mxu0 %v516
        %718 = vmatprep.subr.mxu0 0.0
        %719 = vmatpush2.msra.mxu0 %v515
        %720 = vmatprep.subr.mxu0 0.0
        %721 = vmatpush2.msra.mxu0 %v514
        %722 = vmatprep.subr.mxu0 0.0
        %723 = vmatpush2.msra.mxu0 %v513
        %724 = vmatprep.subr.mxu0 0.0
        %725 = vmatpush2.msra.mxu0 %v512
        %726 = vmatprep.mubr.f32.mxu0 %v459
        %727 = vmatmul.mubr.f32.gmra.mxu0 %v458
        %v728 = vpop.f32.mrf.mxu0
        %v729 = vadd.f32 %v659, %v728
        %v730 = vpop.f32.mrf.mxu0
        %731 = vdwg.mxu0
        %732 = vmatprep.subr.mxu0 0.0
        %733 = vmatpush1.msra.mxu0 %v543
        %734 = vmatprep.subr.mxu0 0.0
        %735 = vmatpush1.msra.mxu0 %v542
        %736 = vmatprep.subr.mxu0 0.0
        %737 = vmatpush1.msra.mxu0 %v541
        %738 = vmatprep.subr.mxu0 0.0
        %739 = vmatpush1.msra.mxu0 %v540
        %740 = vmatprep.subr.mxu0 0.0
        %741 = vmatpush1.msra.mxu0 %v539
        %742 = vmatprep.subr.mxu0 0.0
        %743 = vmatpush1.msra.mxu0 %v538
        %744 = vmatprep.subr.mxu0 0.0
        %745 = vmatpush1.msra.mxu0 %v537
        %746 = vmatprep.subr.mxu0 0.0
        %747 = vmatpush1.msra.mxu0 %v536
        %748 = vmatprep.subr.mxu0 0.0
        %749 = vmatpush1.msra.mxu0 %v535
        %750 = vmatprep.subr.mxu0 0.0
        %751 = vmatpush1.msra.mxu0 %v534
        %752 = vmatprep.subr.mxu0 0.0
        %753 = vmatpush1.msra.mxu0 %v533
        %754 = vmatprep.subr.mxu0 0.0
        %755 = vmatpush1.msra.mxu0 %v532
        %756 = vmatprep.subr.mxu0 0.0
        %757 = vmatpush1.msra.mxu0 %v531
        %758 = vmatprep.subr.mxu0 0.0
        %759 = vmatpush1.msra.mxu0 %v530
        %760 = vmatprep.subr.mxu0 0.0
        %761 = vmatpush1.msra.mxu0 %v529
        %762 = vmatprep.subr.mxu0 0.0
        %763 = vmatpush1.msra.mxu0 %v528
        %764 = vmatprep.subr.mxu0 0.0
        %765 = vmatpush2.msra.mxu0 %v559
        %766 = vmatprep.subr.mxu0 0.0
        %767 = vmatpush2.msra.mxu0 %v558
        %768 = vmatprep.subr.mxu0 0.0
        %769 = vmatpush2.msra.mxu0 %v557
        %770 = vmatprep.subr.mxu0 0.0
        %771 = vmatpush2.msra.mxu0 %v556
        %772 = vmatprep.subr.mxu0 0.0
        %773 = vmatpush2.msra.mxu0 %v555
        %774 = vmatprep.subr.mxu0 0.0
        %775 = vmatpush2.msra.mxu0 %v554
        %776 = vmatprep.subr.mxu0 0.0
        %777 = vmatpush2.msra.mxu0 %v553
        %778 = vmatprep.subr.mxu0 0.0
        %779 = vmatpush2.msra.mxu0 %v552
        %780 = vmatprep.subr.mxu0 0.0
        %781 = vmatpush2.msra.mxu0 %v551
        %782 = vmatprep.subr.mxu0 0.0
        %783 = vmatpush2.msra.mxu0 %v550
        %784 = vmatprep.subr.mxu0 0.0
        %785 = vmatpush2.msra.mxu0 %v549
        %786 = vmatprep.subr.mxu0 0.0
        %787 = vmatpush2.msra.mxu0 %v548
        %788 = vmatprep.subr.mxu0 0.0
        %789 = vmatpush2.msra.mxu0 %v547
        %790 = vmatprep.subr.mxu0 0.0
        %791 = vmatpush2.msra.mxu0 %v546
        %792 = vmatprep.subr.mxu0 0.0
        %793 = vmatpush2.msra.mxu0 %v545
        %794 = vmatprep.subr.mxu0 0.0
        %795 = vmatpush2.msra.mxu0 %v544
        %796 = vmatprep.mubr.f32.mxu0 %v461
        %797 = vmatmul.mubr.f32.gmra.mxu0 %v460
        %v798 = vpop.f32.mrf.mxu0
        %v799 = vadd.f32 %v729, %v798
        %v800 = vpop.f32.mrf.mxu0
        %801 = vdwg.mxu0
        %802 = vmatprep.subr.mxu0 0.0
        %803 = vmatpush1.msra.mxu0 %v575
        %804 = vmatprep.subr.mxu0 0.0
        %805 = vmatpush1.msra.mxu0 %v574
        %806 = vmatprep.subr.mxu0 0.0
        %807 = vmatpush1.msra.mxu0 %v573
        %808 = vmatprep.subr.mxu0 0.0
        %809 = vmatpush1.msra.mxu0 %v572
        %810 = vmatprep.subr.mxu0 0.0
        %811 = vmatpush1.msra.mxu0 %v571
        %812 = vmatprep.subr.mxu0 0.0
        %813 = vmatpush1.msra.mxu0 %v570
        %814 = vmatprep.subr.mxu0 0.0
        %815 = vmatpush1.msra.mxu0 %v569
        %816 = vmatprep.subr.mxu0 0.0
        %817 = vmatpush1.msra.mxu0 %v568
        %818 = vmatprep.subr.mxu0 0.0
        %819 = vmatpush1.msra.mxu0 %v567
        %820 = vmatprep.subr.mxu0 0.0
        %821 = vmatpush1.msra.mxu0 %v566
        %822 = vmatprep.subr.mxu0 0.0
        %823 = vmatpush1.msra.mxu0 %v565
        %824 = vmatprep.subr.mxu0 0.0
        %825 = vmatpush1.msra.mxu0 %v564
        %826 = vmatprep.subr.mxu0 0.0
        %827 = vmatpush1.msra.mxu0 %v563
        %828 = vmatprep.subr.mxu0 0.0
        %829 = vmatpush1.msra.mxu0 %v562
        %830 = vmatprep.subr.mxu0 0.0
        %831 = vmatpush1.msra.mxu0 %v561
        %832 = vmatprep.subr.mxu0 0.0
        %833 = vmatpush1.msra.mxu0 %v560
        %834 = vmatprep.subr.mxu0 0.0
        %835 = vmatpush2.msra.mxu0 %v591
        %836 = vmatprep.subr.mxu0 0.0
        %837 = vmatpush2.msra.mxu0 %v590
        %838 = vmatprep.subr.mxu0 0.0
        %839 = vmatpush2.msra.mxu0 %v589
        %840 = vmatprep.subr.mxu0 0.0
        %841 = vmatpush2.msra.mxu0 %v588
        %842 = vmatprep.subr.mxu0 0.0
        %843 = vmatpush2.msra.mxu0 %v587
        %844 = vmatprep.subr.mxu0 0.0
        %845 = vmatpush2.msra.mxu0 %v586
        %846 = vmatprep.subr.mxu0 0.0
        %847 = vmatpush2.msra.mxu0 %v585
        %848 = vmatprep.subr.mxu0 0.0
        %849 = vmatpush2.msra.mxu0 %v584
        %850 = vmatprep.subr.mxu0 0.0
        %851 = vmatpush2.msra.mxu0 %v583
        %852 = vmatprep.subr.mxu0 0.0
        %853 = vmatpush2.msra.mxu0 %v582
        %854 = vmatprep.subr.mxu0 0.0
        %855 = vmatpush2.msra.mxu0 %v581
        %856 = vmatprep.subr.mxu0 0.0
        %857 = vmatpush2.msra.mxu0 %v580
        %858 = vmatprep.subr.mxu0 0.0
        %859 = vmatpush2.msra.mxu0 %v579
        %860 = vmatprep.subr.mxu0 0.0
        %861 = vmatpush2.msra.mxu0 %v578
        %862 = vmatprep.subr.mxu0 0.0
        %863 = vmatpush2.msra.mxu0 %v577
        %864 = vmatprep.subr.mxu0 0.0
        %865 = vmatpush2.msra.mxu0 %v576
        %866 = vmatprep.mubr.f32.mxu0 %v463
        %867 = vmatmul.mubr.f32.gmra.mxu0 %v462
        %v868 = vpop.f32.mrf.mxu0
        %v869 = vadd.f32 %v799, %v868
        %v870 = vpop.f32.mrf.mxu0
        %871 = vdwg.mxu0
        %v872 = vld [vmem:[%s3] sm:$0x1]
        %v874 = vlaneseq
        %v875 = vshrl.u32 %v874, 7
        %v876 = vsub.s32 0, %v875
        %v877 = vrot.slane %v872, %v876
        %v879 = vmul.f32 %v869, %v877
        %v880 = vld [vmem:[#allocation8] sm:$0x1]
        %v882 = vlaneseq
        %v883 = vshrl.u32 %v882, 7
        %v884 = vsub.s32 0, %v883
        %v885 = vrot.slane %v880, %v884
        %v887 = vadd.f32 %v879, %v885
        %v888 = vmax.f32 %v887, 0.0
        %v889 = vld [vmem:[#allocation10] sm:$0xff]
        %v890 = vld [vmem:[#allocation10 + $0x8] sm:$0xff]
        %v891 = vld [vmem:[#allocation10 + $0x10] sm:$0xff]
        %v892 = vld [vmem:[#allocation10 + $0x18] sm:$0xff]
        %v893 = vld [vmem:[#allocation10 + $0x20] sm:$0xff]
        %v894 = vld [vmem:[#allocation10 + $0x28] sm:$0xff]
        %v895 = vld [vmem:[#allocation10 + $0x30] sm:$0xff]
        %v896 = vld [vmem:[#allocation10 + $0x38] sm:$0xff]
        %v897 = vld [vmem:[#allocation10 + $0x40] sm:$0xff]
        %v898 = vld [vmem:[#allocation10 + $0x48] sm:$0xff]
        %v899 = vld [vmem:[#allocation10 + $0x50] sm:$0xff]
        %v900 = vld [vmem:[#allocation10 + $0x58] sm:$0xff]
        %v901 = vld [vmem:[#allocation10 + $0x60] sm:$0xff]
        %v902 = vld [vmem:[#allocation10 + $0x68] sm:$0xff]
        %v903 = vld [vmem:[#allocation10 + $0x70] sm:$0xff]
        %v904 = vld [vmem:[#allocation10 + $0x78] sm:$0xff]
        %905 = vmatprep.subr.mxu0 0.0
        %906 = vmatpush1.msra.mxu0 %v904
        %907 = vmatprep.subr.mxu0 0.0
        %908 = vmatpush1.msra.mxu0 %v903
        %909 = vmatprep.subr.mxu0 0.0
        %910 = vmatpush1.msra.mxu0 %v902
        %911 = vmatprep.subr.mxu0 0.0
        %912 = vmatpush1.msra.mxu0 %v901
        %913 = vmatprep.subr.mxu0 0.0
        %914 = vmatpush1.msra.mxu0 %v900
        %915 = vmatprep.subr.mxu0 0.0
        %916 = vmatpush1.msra.mxu0 %v899
        %917 = vmatprep.subr.mxu0 0.0
        %918 = vmatpush1.msra.mxu0 %v898
        %919 = vmatprep.subr.mxu0 0.0
        %920 = vmatpush1.msra.mxu0 %v897
        %921 = vmatprep.subr.mxu0 0.0
        %922 = vmatpush1.msra.mxu0 %v896
        %923 = vmatprep.subr.mxu0 0.0
        %924 = vmatpush1.msra.mxu0 %v895
        %925 = vmatprep.subr.mxu0 0.0
        %926 = vmatpush1.msra.mxu0 %v894
        %927 = vmatprep.subr.mxu0 0.0
        %928 = vmatpush1.msra.mxu0 %v893
        %929 = vmatprep.subr.mxu0 0.0
        %930 = vmatpush1.msra.mxu0 %v892
        %931 = vmatprep.subr.mxu0 0.0
        %932 = vmatpush1.msra.mxu0 %v891
        %933 = vmatprep.subr.mxu0 0.0
        %934 = vmatpush1.msra.mxu0 %v890
        %935 = vmatprep.subr.mxu0 0.0
        %936 = vmatpush1.msra.mxu0 %v889
        %937 = vmatprep.subr.mxu0 0.0
        %938 = vmatpush2.msra.mxu0 0.0
        %939 = vmatprep.subr.mxu0 0.0
        %940 = vmatpush2.msra.mxu0 0.0
        %941 = vmatprep.subr.mxu0 0.0
        %942 = vmatpush2.msra.mxu0 0.0
        %943 = vmatprep.subr.mxu0 0.0
        %944 = vmatpush2.msra.mxu0 0.0
        %945 = vmatprep.subr.mxu0 0.0
        %946 = vmatpush2.msra.mxu0 0.0
        %947 = vmatprep.subr.mxu0 0.0
        %948 = vmatpush2.msra.mxu0 0.0
        %949 = vmatprep.subr.mxu0 0.0
        %950 = vmatpush2.msra.mxu0 0.0
        %951 = vmatprep.subr.mxu0 0.0
        %952 = vmatpush2.msra.mxu0 0.0
        %953 = vmatprep.subr.mxu0 0.0
        %954 = vmatpush2.msra.mxu0 0.0
        %955 = vmatprep.subr.mxu0 0.0
        %956 = vmatpush2.msra.mxu0 0.0
        %957 = vmatprep.subr.mxu0 0.0
        %958 = vmatpush2.msra.mxu0 0.0
        %959 = vmatprep.subr.mxu0 0.0
        %960 = vmatpush2.msra.mxu0 0.0
        %961 = vmatprep.subr.mxu0 0.0
        %962 = vmatpush2.msra.mxu0 0.0
        %963 = vmatprep.subr.mxu0 0.0
        %964 = vmatpush2.msra.mxu0 0.0
        %965 = vmatprep.subr.mxu0 0.0
        %966 = vmatpush2.msra.mxu0 0.0
        %967 = vmatprep.subr.mxu0 0.0
        %968 = vmatpush2.msra.mxu0 0.0
        %969 = vmatprep.mubr.f32.mxu0 0.0
        %970 = vmatmul.mubr.f32.gmra.mxu0 %v888
        %v971 = vpop.f32.mrf.mxu0
        %v972 = vadd.f32 0.0, %v971
        %v973 = vpop.f32.mrf.mxu0
        %974 = vdwg.mxu0
        %v975 = vld [vmem:[%s6] sm:$0x1]
        %v977 = vlaneseq
        %v978 = vshrl.u32 %v977, 7
        %v979 = vsub.s32 0, %v978
        %v980 = vrot.slane %v975, %v979
        %v982 = vmul.f32 %v972, %v980
        %v983 = vld [vmem:[#allocation11] sm:$0x1]
        %v985 = vlaneseq
        %v986 = vshrl.u32 %v985, 7
        %v987 = vsub.s32 0, %v986
        %v988 = vrot.slane %v983, %v987
        %v990 = vadd.f32 %v982, %v988
        %v991 = vmax.f32 %v990, 0.0
        %992 = vst [vmem:[%s448] sm:$0xff] %v991
        %v993 = vld [vmem:[%s395] sm:$0xff]
        %v994 = vld [vmem:[%s395 + $0x8] sm:$0xff]
        %v995 = vld [vmem:[%s395 + $0x10] sm:$0xff]
        %v996 = vld [vmem:[%s395 + $0x18] sm:$0xff]
        %v997 = vld [vmem:[%s395 + $0x20] sm:$0xff]
        %v998 = vld [vmem:[%s395 + $0x28] sm:$0xff]
        %v999 = vld [vmem:[%s395 + $0x30] sm:$0xff]
        %v1000 = vld [vmem:[%s395 + $0x38] sm:$0xff]
        %s1001 = scalar_lea.vmem [#allocation7], 1024
        %v1002 = vld [vmem:[%s1001] sm:$0xff]
        %v1003 = vld [vmem:[%s1001 + $0x8] sm:$0xff]
        %v1004 = vld [vmem:[%s1001 + $0x10] sm:$0xff]
        %v1005 = vld [vmem:[%s1001 + $0x18] sm:$0xff]
        %v1006 = vld [vmem:[%s1001 + $0x20] sm:$0xff]
        %v1007 = vld [vmem:[%s1001 + $0x28] sm:$0xff]
        %v1008 = vld [vmem:[%s1001 + $0x30] sm:$0xff]
        %v1009 = vld [vmem:[%s1001 + $0x38] sm:$0xff]
        %v1010 = vld [vmem:[%s1001 + $0x40] sm:$0xff]
        %v1011 = vld [vmem:[%s1001 + $0x48] sm:$0xff]
        %v1012 = vld [vmem:[%s1001 + $0x50] sm:$0xff]
        %v1013 = vld [vmem:[%s1001 + $0x58] sm:$0xff]
        %v1014 = vld [vmem:[%s1001 + $0x60] sm:$0xff]
        %v1015 = vld [vmem:[%s1001 + $0x68] sm:$0xff]
        %v1016 = vld [vmem:[%s1001 + $0x70] sm:$0xff]
        %v1017 = vld [vmem:[%s1001 + $0x78] sm:$0xff]
        %v1018 = vld [vmem:[%s1001 + $0x80] sm:$0xff]
        %v1019 = vld [vmem:[%s1001 + $0x88] sm:$0xff]
        %v1020 = vld [vmem:[%s1001 + $0x90] sm:$0xff]
        %v1021 = vld [vmem:[%s1001 + $0x98] sm:$0xff]
        %v1022 = vld [vmem:[%s1001 + $0xa0] sm:$0xff]
        %v1023 = vld [vmem:[%s1001 + $0xa8] sm:$0xff]
        %v1024 = vld [vmem:[%s1001 + $0xb0] sm:$0xff]
        %v1025 = vld [vmem:[%s1001 + $0xb8] sm:$0xff]
        %v1026 = vld [vmem:[%s1001 + $0xc0] sm:$0xff]
        %v1027 = vld [vmem:[%s1001 + $0xc8] sm:$0xff]
        %v1028 = vld [vmem:[%s1001 + $0xd0] sm:$0xff]
        %v1029 = vld [vmem:[%s1001 + $0xd8] sm:$0xff]
        %v1030 = vld [vmem:[%s1001 + $0xe0] sm:$0xff]
        %v1031 = vld [vmem:[%s1001 + $0xe8] sm:$0xff]
        %v1032 = vld [vmem:[%s1001 + $0xf0] sm:$0xff]
        %v1033 = vld [vmem:[%s1001 + $0xf8] sm:$0xff]
        %v1034 = vld [vmem:[%s1001 + $0x100] sm:$0xff]
        %v1035 = vld [vmem:[%s1001 + $0x108] sm:$0xff]
        %v1036 = vld [vmem:[%s1001 + $0x110] sm:$0xff]
        %v1037 = vld [vmem:[%s1001 + $0x118] sm:$0xff]
        %v1038 = vld [vmem:[%s1001 + $0x120] sm:$0xff]
        %v1039 = vld [vmem:[%s1001 + $0x128] sm:$0xff]
        %v1040 = vld [vmem:[%s1001 + $0x130] sm:$0xff]
        %v1041 = vld [vmem:[%s1001 + $0x138] sm:$0xff]
        %v1042 = vld [vmem:[%s1001 + $0x140] sm:$0xff]
        %v1043 = vld [vmem:[%s1001 + $0x148] sm:$0xff]
        %v1044 = vld [vmem:[%s1001 + $0x150] sm:$0xff]
        %v1045 = vld [vmem:[%s1001 + $0x158] sm:$0xff]
        %v1046 = vld [vmem:[%s1001 + $0x160] sm:$0xff]
        %v1047 = vld [vmem:[%s1001 + $0x168] sm:$0xff]
        %v1048 = vld [vmem:[%s1001 + $0x170] sm:$0xff]
        %v1049 = vld [vmem:[%s1001 + $0x178] sm:$0xff]
        %v1050 = vld [vmem:[%s1001 + $0x180] sm:$0xff]
        %v1051 = vld [vmem:[%s1001 + $0x188] sm:$0xff]
        %v1052 = vld [vmem:[%s1001 + $0x190] sm:$0xff]
        %v1053 = vld [vmem:[%s1001 + $0x198] sm:$0xff]
        %v1054 = vld [vmem:[%s1001 + $0x1a0] sm:$0xff]
        %v1055 = vld [vmem:[%s1001 + $0x1a8] sm:$0xff]
        %v1056 = vld [vmem:[%s1001 + $0x1b0] sm:$0xff]
        %v1057 = vld [vmem:[%s1001 + $0x1b8] sm:$0xff]
        %v1058 = vld [vmem:[%s1001 + $0x1c0] sm:$0xff]
        %v1059 = vld [vmem:[%s1001 + $0x1c8] sm:$0xff]
        %v1060 = vld [vmem:[%s1001 + $0x1d0] sm:$0xff]
        %v1061 = vld [vmem:[%s1001 + $0x1d8] sm:$0xff]
        %v1062 = vld [vmem:[%s1001 + $0x1e0] sm:$0xff]
        %v1063 = vld [vmem:[%s1001 + $0x1e8] sm:$0xff]
        %v1064 = vld [vmem:[%s1001 + $0x1f0] sm:$0xff]
        %v1065 = vld [vmem:[%s1001 + $0x1f8] sm:$0xff]
        %v1066 = vld [vmem:[%s1001 + $0x200] sm:$0xff]
        %v1067 = vld [vmem:[%s1001 + $0x208] sm:$0xff]
        %v1068 = vld [vmem:[%s1001 + $0x210] sm:$0xff]
        %v1069 = vld [vmem:[%s1001 + $0x218] sm:$0xff]
        %v1070 = vld [vmem:[%s1001 + $0x220] sm:$0xff]
        %v1071 = vld [vmem:[%s1001 + $0x228] sm:$0xff]
        %v1072 = vld [vmem:[%s1001 + $0x230] sm:$0xff]
        %v1073 = vld [vmem:[%s1001 + $0x238] sm:$0xff]
        %v1074 = vld [vmem:[%s1001 + $0x240] sm:$0xff]
        %v1075 = vld [vmem:[%s1001 + $0x248] sm:$0xff]
        %v1076 = vld [vmem:[%s1001 + $0x250] sm:$0xff]
        %v1077 = vld [vmem:[%s1001 + $0x258] sm:$0xff]
        %v1078 = vld [vmem:[%s1001 + $0x260] sm:$0xff]
        %v1079 = vld [vmem:[%s1001 + $0x268] sm:$0xff]
        %v1080 = vld [vmem:[%s1001 + $0x270] sm:$0xff]
        %v1081 = vld [vmem:[%s1001 + $0x278] sm:$0xff]
        %v1082 = vld [vmem:[%s1001 + $0x280] sm:$0xff]
        %v1083 = vld [vmem:[%s1001 + $0x288] sm:$0xff]
        %v1084 = vld [vmem:[%s1001 + $0x290] sm:$0xff]
        %v1085 = vld [vmem:[%s1001 + $0x298] sm:$0xff]
        %v1086 = vld [vmem:[%s1001 + $0x2a0] sm:$0xff]
        %v1087 = vld [vmem:[%s1001 + $0x2a8] sm:$0xff]
        %v1088 = vld [vmem:[%s1001 + $0x2b0] sm:$0xff]
        %v1089 = vld [vmem:[%s1001 + $0x2b8] sm:$0xff]
        %v1090 = vld [vmem:[%s1001 + $0x2c0] sm:$0xff]
        %v1091 = vld [vmem:[%s1001 + $0x2c8] sm:$0xff]
        %v1092 = vld [vmem:[%s1001 + $0x2d0] sm:$0xff]
        %v1093 = vld [vmem:[%s1001 + $0x2d8] sm:$0xff]
        %v1094 = vld [vmem:[%s1001 + $0x2e0] sm:$0xff]
        %v1095 = vld [vmem:[%s1001 + $0x2e8] sm:$0xff]
        %v1096 = vld [vmem:[%s1001 + $0x2f0] sm:$0xff]
        %v1097 = vld [vmem:[%s1001 + $0x2f8] sm:$0xff]
        %v1098 = vld [vmem:[%s1001 + $0x300] sm:$0xff]
        %v1099 = vld [vmem:[%s1001 + $0x308] sm:$0xff]
        %v1100 = vld [vmem:[%s1001 + $0x310] sm:$0xff]
        %v1101 = vld [vmem:[%s1001 + $0x318] sm:$0xff]
        %v1102 = vld [vmem:[%s1001 + $0x320] sm:$0xff]
        %v1103 = vld [vmem:[%s1001 + $0x328] sm:$0xff]
        %v1104 = vld [vmem:[%s1001 + $0x330] sm:$0xff]
        %v1105 = vld [vmem:[%s1001 + $0x338] sm:$0xff]
        %v1106 = vld [vmem:[%s1001 + $0x340] sm:$0xff]
        %v1107 = vld [vmem:[%s1001 + $0x348] sm:$0xff]
        %v1108 = vld [vmem:[%s1001 + $0x350] sm:$0xff]
        %v1109 = vld [vmem:[%s1001 + $0x358] sm:$0xff]
        %v1110 = vld [vmem:[%s1001 + $0x360] sm:$0xff]
        %v1111 = vld [vmem:[%s1001 + $0x368] sm:$0xff]
        %v1112 = vld [vmem:[%s1001 + $0x370] sm:$0xff]
        %v1113 = vld [vmem:[%s1001 + $0x378] sm:$0xff]
        %v1114 = vld [vmem:[%s1001 + $0x380] sm:$0xff]
        %v1115 = vld [vmem:[%s1001 + $0x388] sm:$0xff]
        %v1116 = vld [vmem:[%s1001 + $0x390] sm:$0xff]
        %v1117 = vld [vmem:[%s1001 + $0x398] sm:$0xff]
        %v1118 = vld [vmem:[%s1001 + $0x3a0] sm:$0xff]
        %v1119 = vld [vmem:[%s1001 + $0x3a8] sm:$0xff]
        %v1120 = vld [vmem:[%s1001 + $0x3b0] sm:$0xff]
        %v1121 = vld [vmem:[%s1001 + $0x3b8] sm:$0xff]
        %v1122 = vld [vmem:[%s1001 + $0x3c0] sm:$0xff]
        %v1123 = vld [vmem:[%s1001 + $0x3c8] sm:$0xff]
        %v1124 = vld [vmem:[%s1001 + $0x3d0] sm:$0xff]
        %v1125 = vld [vmem:[%s1001 + $0x3d8] sm:$0xff]
        %v1126 = vld [vmem:[%s1001 + $0x3e0] sm:$0xff]
        %v1127 = vld [vmem:[%s1001 + $0x3e8] sm:$0xff]
        %v1128 = vld [vmem:[%s1001 + $0x3f0] sm:$0xff]
        %v1129 = vld [vmem:[%s1001 + $0x3f8] sm:$0xff]
        %1130 = vmatprep.subr.mxu0 0.0
        %1131 = vmatpush1.msra.mxu0 %v1017
        %1132 = vmatprep.subr.mxu0 0.0
        %1133 = vmatpush1.msra.mxu0 %v1016
        %1134 = vmatprep.subr.mxu0 0.0
        %1135 = vmatpush1.msra.mxu0 %v1015
        %1136 = vmatprep.subr.mxu0 0.0
        %1137 = vmatpush1.msra.mxu0 %v1014
        %1138 = vmatprep.subr.mxu0 0.0
        %1139 = vmatpush1.msra.mxu0 %v1013
        %1140 = vmatprep.subr.mxu0 0.0
        %1141 = vmatpush1.msra.mxu0 %v1012
        %1142 = vmatprep.subr.mxu0 0.0
        %1143 = vmatpush1.msra.mxu0 %v1011
        %1144 = vmatprep.subr.mxu0 0.0
        %1145 = vmatpush1.msra.mxu0 %v1010
        %1146 = vmatprep.subr.mxu0 0.0
        %1147 = vmatpush1.msra.mxu0 %v1009
        %1148 = vmatprep.subr.mxu0 0.0
        %1149 = vmatpush1.msra.mxu0 %v1008
        %1150 = vmatprep.subr.mxu0 0.0
        %1151 = vmatpush1.msra.mxu0 %v1007
        %1152 = vmatprep.subr.mxu0 0.0
        %1153 = vmatpush1.msra.mxu0 %v1006
        %1154 = vmatprep.subr.mxu0 0.0
        %1155 = vmatpush1.msra.mxu0 %v1005
        %1156 = vmatprep.subr.mxu0 0.0
        %1157 = vmatpush1.msra.mxu0 %v1004
        %1158 = vmatprep.subr.mxu0 0.0
        %1159 = vmatpush1.msra.mxu0 %v1003
        %1160 = vmatprep.subr.mxu0 0.0
        %1161 = vmatpush1.msra.mxu0 %v1002
        %1162 = vmatprep.subr.mxu0 0.0
        %1163 = vmatpush2.msra.mxu0 %v1033
        %1164 = vmatprep.subr.mxu0 0.0
        %1165 = vmatpush2.msra.mxu0 %v1032
        %1166 = vmatprep.subr.mxu0 0.0
        %1167 = vmatpush2.msra.mxu0 %v1031
        %1168 = vmatprep.subr.mxu0 0.0
        %1169 = vmatpush2.msra.mxu0 %v1030
        %1170 = vmatprep.subr.mxu0 0.0
        %1171 = vmatpush2.msra.mxu0 %v1029
        %1172 = vmatprep.subr.mxu0 0.0
        %1173 = vmatpush2.msra.mxu0 %v1028
        %1174 = vmatprep.subr.mxu0 0.0
        %1175 = vmatpush2.msra.mxu0 %v1027
        %1176 = vmatprep.subr.mxu0 0.0
        %1177 = vmatpush2.msra.mxu0 %v1026
        %1178 = vmatprep.subr.mxu0 0.0
        %1179 = vmatpush2.msra.mxu0 %v1025
        %1180 = vmatprep.subr.mxu0 0.0
        %1181 = vmatpush2.msra.mxu0 %v1024
        %1182 = vmatprep.subr.mxu0 0.0
        %1183 = vmatpush2.msra.mxu0 %v1023
        %1184 = vmatprep.subr.mxu0 0.0
        %1185 = vmatpush2.msra.mxu0 %v1022
        %1186 = vmatprep.subr.mxu0 0.0
        %1187 = vmatpush2.msra.mxu0 %v1021
        %1188 = vmatprep.subr.mxu0 0.0
        %1189 = vmatpush2.msra.mxu0 %v1020
        %1190 = vmatprep.subr.mxu0 0.0
        %1191 = vmatpush2.msra.mxu0 %v1019
        %1192 = vmatprep.subr.mxu0 0.0
        %1193 = vmatpush2.msra.mxu0 %v1018
        %1194 = vmatprep.mubr.f32.mxu0 %v994
        %1195 = vmatmul.mubr.f32.gmra.mxu0 %v993
        %v1196 = vpop.f32.mrf.mxu0
        %v1197 = vadd.f32 0.0, %v1196
        %v1198 = vpop.f32.mrf.mxu0
        %1199 = vdwg.mxu0
        %1200 = vmatprep.subr.mxu0 0.0
        %1201 = vmatpush1.msra.mxu0 %v1049
        %1202 = vmatprep.subr.mxu0 0.0
        %1203 = vmatpush1.msra.mxu0 %v1048
        %1204 = vmatprep.subr.mxu0 0.0
        %1205 = vmatpush1.msra.mxu0 %v1047
        %1206 = vmatprep.subr.mxu0 0.0
        %1207 = vmatpush1.msra.mxu0 %v1046
        %1208 = vmatprep.subr.mxu0 0.0
        %1209 = vmatpush1.msra.mxu0 %v1045
        %1210 = vmatprep.subr.mxu0 0.0
        %1211 = vmatpush1.msra.mxu0 %v1044
        %1212 = vmatprep.subr.mxu0 0.0
        %1213 = vmatpush1.msra.mxu0 %v1043
        %1214 = vmatprep.subr.mxu0 0.0
        %1215 = vmatpush1.msra.mxu0 %v1042
        %1216 = vmatprep.subr.mxu0 0.0
        %1217 = vmatpush1.msra.mxu0 %v1041
        %1218 = vmatprep.subr.mxu0 0.0
        %1219 = vmatpush1.msra.mxu0 %v1040
        %1220 = vmatprep.subr.mxu0 0.0
        %1221 = vmatpush1.msra.mxu0 %v1039
        %1222 = vmatprep.subr.mxu0 0.0
        %1223 = vmatpush1.msra.mxu0 %v1038
        %1224 = vmatprep.subr.mxu0 0.0
        %1225 = vmatpush1.msra.mxu0 %v1037
        %1226 = vmatprep.subr.mxu0 0.0
        %1227 = vmatpush1.msra.mxu0 %v1036
        %1228 = vmatprep.subr.mxu0 0.0
        %1229 = vmatpush1.msra.mxu0 %v1035
        %1230 = vmatprep.subr.mxu0 0.0
        %1231 = vmatpush1.msra.mxu0 %v1034
        %1232 = vmatprep.subr.mxu0 0.0
        %1233 = vmatpush2.msra.mxu0 %v1065
        %1234 = vmatprep.subr.mxu0 0.0
        %1235 = vmatpush2.msra.mxu0 %v1064
        %1236 = vmatprep.subr.mxu0 0.0
        %1237 = vmatpush2.msra.mxu0 %v1063
        %1238 = vmatprep.subr.mxu0 0.0
        %1239 = vmatpush2.msra.mxu0 %v1062
        %1240 = vmatprep.subr.mxu0 0.0
        %1241 = vmatpush2.msra.mxu0 %v1061
        %1242 = vmatprep.subr.mxu0 0.0
        %1243 = vmatpush2.msra.mxu0 %v1060
        %1244 = vmatprep.subr.mxu0 0.0
        %1245 = vmatpush2.msra.mxu0 %v1059
        %1246 = vmatprep.subr.mxu0 0.0
        %1247 = vmatpush2.msra.mxu0 %v1058
        %1248 = vmatprep.subr.mxu0 0.0
        %1249 = vmatpush2.msra.mxu0 %v1057
        %1250 = vmatprep.subr.mxu0 0.0
        %1251 = vmatpush2.msra.mxu0 %v1056
        %1252 = vmatprep.subr.mxu0 0.0
        %1253 = vmatpush2.msra.mxu0 %v1055
        %1254 = vmatprep.subr.mxu0 0.0
        %1255 = vmatpush2.msra.mxu0 %v1054
        %1256 = vmatprep.subr.mxu0 0.0
        %1257 = vmatpush2.msra.mxu0 %v1053
        %1258 = vmatprep.subr.mxu0 0.0
        %1259 = vmatpush2.msra.mxu0 %v1052
        %1260 = vmatprep.subr.mxu0 0.0
        %1261 = vmatpush2.msra.mxu0 %v1051
        %1262 = vmatprep.subr.mxu0 0.0
        %1263 = vmatpush2.msra.mxu0 %v1050
        %1264 = vmatprep.mubr.f32.mxu0 %v996
        %1265 = vmatmul.mubr.f32.gmra.mxu0 %v995
        %v1266 = vpop.f32.mrf.mxu0
        %v1267 = vadd.f32 %v1197, %v1266
        %v1268 = vpop.f32.mrf.mxu0
        %1269 = vdwg.mxu0
        %1270 = vmatprep.subr.mxu0 0.0
        %1271 = vmatpush1.msra.mxu0 %v1081
        %1272 = vmatprep.subr.mxu0 0.0
        %1273 = vmatpush1.msra.mxu0 %v1080
        %1274 = vmatprep.subr.mxu0 0.0
        %1275 = vmatpush1.msra.mxu0 %v1079
        %1276 = vmatprep.subr.mxu0 0.0
        %1277 = vmatpush1.msra.mxu0 %v1078
        %1278 = vmatprep.subr.mxu0 0.0
        %1279 = vmatpush1.msra.mxu0 %v1077
        %1280 = vmatprep.subr.mxu0 0.0
        %1281 = vmatpush1.msra.mxu0 %v1076
        %1282 = vmatprep.subr.mxu0 0.0
        %1283 = vmatpush1.msra.mxu0 %v1075
        %1284 = vmatprep.subr.mxu0 0.0
        %1285 = vmatpush1.msra.mxu0 %v1074
        %1286 = vmatprep.subr.mxu0 0.0
        %1287 = vmatpush1.msra.mxu0 %v1073
        %1288 = vmatprep.subr.mxu0 0.0
        %1289 = vmatpush1.msra.mxu0 %v1072
        %1290 = vmatprep.subr.mxu0 0.0
        %1291 = vmatpush1.msra.mxu0 %v1071
        %1292 = vmatprep.subr.mxu0 0.0
        %1293 = vmatpush1.msra.mxu0 %v1070
        %1294 = vmatprep.subr.mxu0 0.0
        %1295 = vmatpush1.msra.mxu0 %v1069
        %1296 = vmatprep.subr.mxu0 0.0
        %1297 = vmatpush1.msra.mxu0 %v1068
        %1298 = vmatprep.subr.mxu0 0.0
        %1299 = vmatpush1.msra.mxu0 %v1067
        %1300 = vmatprep.subr.mxu0 0.0
        %1301 = vmatpush1.msra.mxu0 %v1066
        %1302 = vmatprep.subr.mxu0 0.0
        %1303 = vmatpush2.msra.mxu0 %v1097
        %1304 = vmatprep.subr.mxu0 0.0
        %1305 = vmatpush2.msra.mxu0 %v1096
        %1306 = vmatprep.subr.mxu0 0.0
        %1307 = vmatpush2.msra.mxu0 %v1095
        %1308 = vmatprep.subr.mxu0 0.0
        %1309 = vmatpush2.msra.mxu0 %v1094
        %1310 = vmatprep.subr.mxu0 0.0
        %1311 = vmatpush2.msra.mxu0 %v1093
        %1312 = vmatprep.subr.mxu0 0.0
        %1313 = vmatpush2.msra.mxu0 %v1092
        %1314 = vmatprep.subr.mxu0 0.0
        %1315 = vmatpush2.msra.mxu0 %v1091
        %1316 = vmatprep.subr.mxu0 0.0
        %1317 = vmatpush2.msra.mxu0 %v1090
        %1318 = vmatprep.subr.mxu0 0.0
        %1319 = vmatpush2.msra.mxu0 %v1089
        %1320 = vmatprep.subr.mxu0 0.0
        %1321 = vmatpush2.msra.mxu0 %v1088
        %1322 = vmatprep.subr.mxu0 0.0
        %1323 = vmatpush2.msra.mxu0 %v1087
        %1324 = vmatprep.subr.mxu0 0.0
        %1325 = vmatpush2.msra.mxu0 %v1086
        %1326 = vmatprep.subr.mxu0 0.0
        %1327 = vmatpush2.msra.mxu0 %v1085
        %1328 = vmatprep.subr.mxu0 0.0
        %1329 = vmatpush2.msra.mxu0 %v1084
        %1330 = vmatprep.subr.mxu0 0.0
        %1331 = vmatpush2.msra.mxu0 %v1083
        %1332 = vmatprep.subr.mxu0 0.0
        %1333 = vmatpush2.msra.mxu0 %v1082
        %1334 = vmatprep.mubr.f32.mxu0 %v998
        %1335 = vmatmul.mubr.f32.gmra.mxu0 %v997
        %v1336 = vpop.f32.mrf.mxu0
        %v1337 = vadd.f32 %v1267, %v1336
        %v1338 = vpop.f32.mrf.mxu0
        %1339 = vdwg.mxu0
        %1340 = vmatprep.subr.mxu0 0.0
        %1341 = vmatpush1.msra.mxu0 %v1113
        %1342 = vmatprep.subr.mxu0 0.0
        %1343 = vmatpush1.msra.mxu0 %v1112
        %1344 = vmatprep.subr.mxu0 0.0
        %1345 = vmatpush1.msra.mxu0 %v1111
        %1346 = vmatprep.subr.mxu0 0.0
        %1347 = vmatpush1.msra.mxu0 %v1110
        %1348 = vmatprep.subr.mxu0 0.0
        %1349 = vmatpush1.msra.mxu0 %v1109
        %1350 = vmatprep.subr.mxu0 0.0
        %1351 = vmatpush1.msra.mxu0 %v1108
        %1352 = vmatprep.subr.mxu0 0.0
        %1353 = vmatpush1.msra.mxu0 %v1107
        %1354 = vmatprep.subr.mxu0 0.0
        %1355 = vmatpush1.msra.mxu0 %v1106
        %1356 = vmatprep.subr.mxu0 0.0
        %1357 = vmatpush1.msra.mxu0 %v1105
        %1358 = vmatprep.subr.mxu0 0.0
        %1359 = vmatpush1.msra.mxu0 %v1104
        %1360 = vmatprep.subr.mxu0 0.0
        %1361 = vmatpush1.msra.mxu0 %v1103
        %1362 = vmatprep.subr.mxu0 0.0
        %1363 = vmatpush1.msra.mxu0 %v1102
        %1364 = vmatprep.subr.mxu0 0.0
        %1365 = vmatpush1.msra.mxu0 %v1101
        %1366 = vmatprep.subr.mxu0 0.0
        %1367 = vmatpush1.msra.mxu0 %v1100
        %1368 = vmatprep.subr.mxu0 0.0
        %1369 = vmatpush1.msra.mxu0 %v1099
        %1370 = vmatprep.subr.mxu0 0.0
        %1371 = vmatpush1.msra.mxu0 %v1098
        %1372 = vmatprep.subr.mxu0 0.0
        %1373 = vmatpush2.msra.mxu0 %v1129
        %1374 = vmatprep.subr.mxu0 0.0
        %1375 = vmatpush2.msra.mxu0 %v1128
        %1376 = vmatprep.subr.mxu0 0.0
        %1377 = vmatpush2.msra.mxu0 %v1127
        %1378 = vmatprep.subr.mxu0 0.0
        %1379 = vmatpush2.msra.mxu0 %v1126
        %1380 = vmatprep.subr.mxu0 0.0
        %1381 = vmatpush2.msra.mxu0 %v1125
        %1382 = vmatprep.subr.mxu0 0.0
        %1383 = vmatpush2.msra.mxu0 %v1124
        %1384 = vmatprep.subr.mxu0 0.0
        %1385 = vmatpush2.msra.mxu0 %v1123
        %1386 = vmatprep.subr.mxu0 0.0
        %1387 = vmatpush2.msra.mxu0 %v1122
        %1388 = vmatprep.subr.mxu0 0.0
        %1389 = vmatpush2.msra.mxu0 %v1121
        %1390 = vmatprep.subr.mxu0 0.0
        %1391 = vmatpush2.msra.mxu0 %v1120
        %1392 = vmatprep.subr.mxu0 0.0
        %1393 = vmatpush2.msra.mxu0 %v1119
        %1394 = vmatprep.subr.mxu0 0.0
        %1395 = vmatpush2.msra.mxu0 %v1118
        %1396 = vmatprep.subr.mxu0 0.0
        %1397 = vmatpush2.msra.mxu0 %v1117
        %1398 = vmatprep.subr.mxu0 0.0
        %1399 = vmatpush2.msra.mxu0 %v1116
        %1400 = vmatprep.subr.mxu0 0.0
        %1401 = vmatpush2.msra.mxu0 %v1115
        %1402 = vmatprep.subr.mxu0 0.0
        %1403 = vmatpush2.msra.mxu0 %v1114
        %1404 = vmatprep.mubr.f32.mxu0 %v1000
        %1405 = vmatmul.mubr.f32.gmra.mxu0 %v999
        %v1406 = vpop.f32.mrf.mxu0
        %v1407 = vadd.f32 %v1337, %v1406
        %v1408 = vpop.f32.mrf.mxu0
        %1409 = vdwg.mxu0
        %s1410 = scalar_lea.vmem %s3, 1
        %v1411 = vld [vmem:[%s1410] sm:$0x1]
        %v1413 = vlaneseq
        %v1414 = vshrl.u32 %v1413, 7
        %v1415 = vsub.s32 0, %v1414
        %v1416 = vrot.slane %v1411, %v1415
        %v1418 = vmul.f32 %v1407, %v1416
        %s1419 = scalar_lea.vmem [#allocation8], 1
        %v1420 = vld [vmem:[%s1419] sm:$0x1]
        %v1422 = vlaneseq
        %v1423 = vshrl.u32 %v1422, 7
        %v1424 = vsub.s32 0, %v1423
        %v1425 = vrot.slane %v1420, %v1424
        %v1427 = vadd.f32 %v1418, %v1425
        %v1428 = vmax.f32 %v1427, 0.0
        %s1429 = scalar_lea.vmem [#allocation10], 128
        %v1430 = vld [vmem:[%s1429] sm:$0xff]
        %v1431 = vld [vmem:[%s1429 + $0x8] sm:$0xff]
        %v1432 = vld [vmem:[%s1429 + $0x10] sm:$0xff]
        %v1433 = vld [vmem:[%s1429 + $0x18] sm:$0xff]
        %v1434 = vld [vmem:[%s1429 + $0x20] sm:$0xff]
        %v1435 = vld [vmem:[%s1429 + $0x28] sm:$0xff]
        %v1436 = vld [vmem:[%s1429 + $0x30] sm:$0xff]
        %v1437 = vld [vmem:[%s1429 + $0x38] sm:$0xff]
        %v1438 = vld [vmem:[%s1429 + $0x40] sm:$0xff]
        %v1439 = vld [vmem:[%s1429 + $0x48] sm:$0xff]
        %v1440 = vld [vmem:[%s1429 + $0x50] sm:$0xff]
        %v1441 = vld [vmem:[%s1429 + $0x58] sm:$0xff]
        %v1442 = vld [vmem:[%s1429 + $0x60] sm:$0xff]
        %v1443 = vld [vmem:[%s1429 + $0x68] sm:$0xff]
        %v1444 = vld [vmem:[%s1429 + $0x70] sm:$0xff]
        %v1445 = vld [vmem:[%s1429 + $0x78] sm:$0xff]
        %1446 = vmatprep.subr.mxu0 0.0
        %1447 = vmatpush1.msra.mxu0 %v1445
        %1448 = vmatprep.subr.mxu0 0.0
        %1449 = vmatpush1.msra.mxu0 %v1444
        %1450 = vmatprep.subr.mxu0 0.0
        %1451 = vmatpush1.msra.mxu0 %v1443
        %1452 = vmatprep.subr.mxu0 0.0
        %1453 = vmatpush1.msra.mxu0 %v1442
        %1454 = vmatprep.subr.mxu0 0.0
        %1455 = vmatpush1.msra.mxu0 %v1441
        %1456 = vmatprep.subr.mxu0 0.0
        %1457 = vmatpush1.msra.mxu0 %v1440
        %1458 = vmatprep.subr.mxu0 0.0
        %1459 = vmatpush1.msra.mxu0 %v1439
        %1460 = vmatprep.subr.mxu0 0.0
        %1461 = vmatpush1.msra.mxu0 %v1438
        %1462 = vmatprep.subr.mxu0 0.0
        %1463 = vmatpush1.msra.mxu0 %v1437
        %1464 = vmatprep.subr.mxu0 0.0
        %1465 = vmatpush1.msra.mxu0 %v1436
        %1466 = vmatprep.subr.mxu0 0.0
        %1467 = vmatpush1.msra.mxu0 %v1435
        %1468 = vmatprep.subr.mxu0 0.0
        %1469 = vmatpush1.msra.mxu0 %v1434
        %1470 = vmatprep.subr.mxu0 0.0
        %1471 = vmatpush1.msra.mxu0 %v1433
        %1472 = vmatprep.subr.mxu0 0.0
        %1473 = vmatpush1.msra.mxu0 %v1432
        %1474 = vmatprep.subr.mxu0 0.0
        %1475 = vmatpush1.msra.mxu0 %v1431
        %1476 = vmatprep.subr.mxu0 0.0
        %1477 = vmatpush1.msra.mxu0 %v1430
        %1478 = vmatprep.subr.mxu0 0.0
        %1479 = vmatpush2.msra.mxu0 0.0
        %1480 = vmatprep.subr.mxu0 0.0
        %1481 = vmatpush2.msra.mxu0 0.0
        %1482 = vmatprep.subr.mxu0 0.0
        %1483 = vmatpush2.msra.mxu0 0.0
        %1484 = vmatprep.subr.mxu0 0.0
        %1485 = vmatpush2.msra.mxu0 0.0
        %1486 = vmatprep.subr.mxu0 0.0
        %1487 = vmatpush2.msra.mxu0 0.0
        %1488 = vmatprep.subr.mxu0 0.0
        %1489 = vmatpush2.msra.mxu0 0.0
        %1490 = vmatprep.subr.mxu0 0.0
        %1491 = vmatpush2.msra.mxu0 0.0
        %1492 = vmatprep.subr.mxu0 0.0
        %1493 = vmatpush2.msra.mxu0 0.0
        %1494 = vmatprep.subr.mxu0 0.0
        %1495 = vmatpush2.msra.mxu0 0.0
        %1496 = vmatprep.subr.mxu0 0.0
        %1497 = vmatpush2.msra.mxu0 0.0
        %1498 = vmatprep.subr.mxu0 0.0
        %1499 = vmatpush2.msra.mxu0 0.0
        %1500 = vmatprep.subr.mxu0 0.0
        %1501 = vmatpush2.msra.mxu0 0.0
        %1502 = vmatprep.subr.mxu0 0.0
        %1503 = vmatpush2.msra.mxu0 0.0
        %1504 = vmatprep.subr.mxu0 0.0
        %1505 = vmatpush2.msra.mxu0 0.0
        %1506 = vmatprep.subr.mxu0 0.0
        %1507 = vmatpush2.msra.mxu0 0.0
        %1508 = vmatprep.subr.mxu0 0.0
        %1509 = vmatpush2.msra.mxu0 0.0
        %1510 = vmatprep.mubr.f32.mxu0 0.0
        %1511 = vmatmul.mubr.f32.gmra.mxu0 %v1428
        %v1512 = vpop.f32.mrf.mxu0
        %v1513 = vadd.f32 0.0, %v1512
        %v1514 = vpop.f32.mrf.mxu0
        %1515 = vdwg.mxu0
        %s1516 = scalar_lea.vmem %s6, 1
        %v1517 = vld [vmem:[%s1516] sm:$0x1]
        %v1519 = vlaneseq
        %v1520 = vshrl.u32 %v1519, 7
        %v1521 = vsub.s32 0, %v1520
        %v1522 = vrot.slane %v1517, %v1521
        %v1524 = vmul.f32 %v1513, %v1522
        %s1525 = scalar_lea.vmem [#allocation11], 1
        %v1526 = vld [vmem:[%s1525] sm:$0x1]
        %v1528 = vlaneseq
        %v1529 = vshrl.u32 %v1528, 7
        %v1530 = vsub.s32 0, %v1529
        %v1531 = vrot.slane %v1526, %v1530
        %v1533 = vadd.f32 %v1524, %v1531
        %v1534 = vmax.f32 %v1533, 0.0
        %1535 = vst [vmem:[%s455] sm:$0xff] %v1534
        %s1536 = sand.u32 %s221, 1
        %s1537 = scalar_lea.sflag [#allocation4], %s1536
        %s1538 = sand.u32 %s221, 1
        %s1539 = smul.addr %s1538, 8
        %s1540 = scalar_lea.vmem [#allocation13], %s1539
        %s1541 = sand.u32 %s247, 1
        %s1542 = scalar_lea.sflag [#allocation15], %s1541
        %s1543 = sand.u32 %s247, 1
        %s1544 = smul.addr %s1543, 8
        %s1545 = scalar_lea.vmem [#allocation14], %s1544
        // Predicated region
        $region77: #{unimodal_detection_forward.1} parent=51 // pred_check
          %p1546 = pneg %p231
        $region78: #{unimodal_detection_forward.1} parent=51 // pred_check_branch
          %1548 = sbr.rel (%p1546) target = $region80
        $region79: #{unimodal_detection_forward.1} parent=51 // pred_region
          %s1550 = ssub.s32 128, 128
          %1551 = vsyncadd %s1537, %s1550
          %s1552 = smul.addr %s35, 128
          %s1553 = scalar_lea.hbm %s8, %s1552
          %s1555 = sshll.u32 %s1540, 4
          %s1556 = int_to_ptr.vmem [resolvable:$true] %s1555
          %1558 = dma.vmem_to_hbm [thread:$0]  %s1556, 128, %s1553, %s1537
        $region80: #{unimodal_detection_forward.1} parent=51 // pred_fallthru
          _
        // Predicated region
        $region81: #{unimodal_detection_forward.1} parent=51 // pred_check
          %p1559 = pneg %p257
        $region82: #{unimodal_detection_forward.1} parent=51 // pred_check_branch
          %1561 = sbr.rel (%p1559) target = $region84
        $region83: #{unimodal_detection_forward.1} parent=51 // pred_region
          %s1563 = ssub.s32 128, 128
          %1564 = vsyncadd %s1542, %s1563
          %s1565 = smul.addr %s35, 128
          %s1566 = scalar_lea.hbm %s9, %s1565
          %s1568 = sshll.u32 %s1545, 4
          %s1569 = int_to_ptr.vmem [resolvable:$true] %s1568
          %1571 = dma.vmem_to_hbm [thread:$0]  %s1569, 128, %s1566, %s1542
        $region84: #{unimodal_detection_forward.1} parent=51 // pred_fallthru
          _
      $region52: #{unimodal_detection_forward.1} parent=5 // pred_fallthru
        _
      %p1572 = scmp.le.s32.totalorder 2, %s30
      // Predicated region
      $region85: #{unimodal_detection_forward.1} parent=5 // pred_check
        %p1573 = pneg %p1572
      $region86: #{unimodal_detection_forward.1} parent=5 // pred_check_branch
        %1575 = sbr.rel (%p1573) target = $region88
      $region87: #{unimodal_detection_forward.1} parent=5 // pred_region
        %s1576 = ssub.s32 %s30, 2
        // Predicated region
        $region89: #{unimodal_detection_forward.1} parent=87 // pred_check
          %p1577 = pneg %p237
        $region90: #{unimodal_detection_forward.1} parent=87 // pred_check_branch
          %1579 = sbr.rel (%p1577) target = $region92
        $region91: #{unimodal_detection_forward.1} parent=87 // pred_region
          %s1580 = sand.u32 %s222, 1
          %s1581 = scalar_lea.sflag [#allocation4], %s1580
          %s1582 = sand.u32 %s222, 1
          %s1583 = smul.addr %s1582, 8
          %s1584 = scalar_lea.vmem [#allocation13], %s1583
          %1585 = dma.done %s1581, 128
        $region92: #{unimodal_detection_forward.1} parent=87 // pred_fallthru
          _
        // Predicated region
        $region93: #{unimodal_detection_forward.1} parent=87 // pred_check
          %p1586 = pneg %p263
        $region94: #{unimodal_detection_forward.1} parent=87 // pred_check_branch
          %1588 = sbr.rel (%p1586) target = $region96
        $region95: #{unimodal_detection_forward.1} parent=87 // pred_region
          %s1589 = sand.u32 %s248, 1
          %s1590 = scalar_lea.sflag [#allocation15], %s1589
          %s1591 = sand.u32 %s248, 1
          %s1592 = smul.addr %s1591, 8
          %s1593 = scalar_lea.vmem [#allocation14], %s1592
          %1594 = dma.done %s1590, 128
        $region96: #{unimodal_detection_forward.1} parent=87 // pred_fallthru
          _
      $region88: #{unimodal_detection_forward.1} parent=5 // pred_fallthru
        _
    $region6: #{unimodal_detection_forward.1} parent=1 // loop_footer
      %s34 = sadd.s32 1, %s30
    $region7: #{unimodal_detection_forward.1} parent=1 // loop_footer_branch
      %29 = sbr.rel target = $region3
    $region8: #{unimodal_detection_forward.1} parent=1 // loop_exit
      _
    %1595 = vsyncpa [#allocation3], 1
    %s1596 = scalar_lea.sflag [#allocation3], 1
    %1597 = vsyncpa %s1596, 1
    %1598 = vsyncpa [#allocation6], 1
    %s1599 = scalar_lea.sflag [#allocation6], 1
    %1600 = vsyncpa %s1599, 1
    %1601 = vsyncpa [#allocation9], 1
    %1602 = vsyncpa [#allocation12], 1
    %1603 = vsyncpa [#allocation4], 1
    %s1604 = scalar_lea.sflag [#allocation4], 1
    %1605 = vsyncpa %s1604, 1
    %1606 = vsyncpa [#allocation15], 1
    %s1607 = scalar_lea.sflag [#allocation15], 1
    %1608 = vsyncpa %s1607, 1

</llo_original>
